<compile_context>
chip_gen: v7x
topology: tpu7x:2x2x1
jax: 0.10.0
libtpu: 0.0.40
codegen_flags: <defaults>
</compile_context>

<pallas_src>
import jax
import jax.numpy as jnp
from jax.experimental import pallas as pl
from jax.experimental.pallas import tpu as pltpu

LAYER_DIMS = [112, 512, 512, 256, 64, 16, 2]  # fc1..fc6
D_IN = LAYER_DIMS[0]
D_OUT = LAYER_DIMS[-1]
N4_PAD = 128   # fc4 output 64  -> 128 lanes
N5_PAD = 128   # fc5 output 16  -> 128 lanes
MAX_TILE_B = 512


def mlp_kernel(x_ref, w1, w2, w3, w4, w5, w6, b_ref, o_ref):
    # Weights bf16; biases packed f32 in b_ref (8, 512), rows 0..5.
    b_all = b_ref[...]                           # (8, 512) f32, loaded once
    h = x_ref[...].astype(jnp.bfloat16)          # (TILE_B, 112) cast in-kernel

    def layer(h, w_ref, row, out_dim, relu):
        y = jnp.dot(h, w_ref[...], preferred_element_type=jnp.float32)
        y = y + b_all[row:row + 1, :out_dim]     # (1, out_dim) broadcast
        if relu:
            return jnp.maximum(y, 0.0).astype(jnp.bfloat16)
        return y                                  # f32 logits

    h = layer(h, w1, 0, 512, True)       # fc1 + ReLU
    h = layer(h, w2, 1, 512, True)       # fc2 + ReLU
    h = layer(h, w3, 2, 256, True)       # fc3 + ReLU
    h = layer(h, w4, 3, N4_PAD, True)    # fc4 + ReLU (lanes 64..127 are zero)
    h = layer(h, w5, 4, N5_PAD, True)    # fc5 + ReLU (lanes 16..127 are zero)
    h = layer(h, w6, 5, D_OUT, False)    # fc6 logits, (TILE_B, 2) f32
    o_ref[...] = h


def init_params(key):
    """PyTorch-style U(-1/sqrt(fan_in), 1/sqrt(fan_in)) init. Returns [(w, b)] f32."""
    params = []
    for i in range(len(LAYER_DIMS) - 1):
        fan_in, fan_out = LAYER_DIMS[i], LAYER_DIMS[i + 1]
        key, kw, kb = jax.random.split(key, 3)
        bound = 1.0 / jnp.sqrt(jnp.float32(fan_in))
        w = jax.random.uniform(kw, (fan_in, fan_out), jnp.float32, -bound, bound)
        b = jax.random.uniform(kb, (fan_out,), jnp.float32, -bound, bound)
        params.append((w, b))
    return params


def pack_params(params):
    """bf16-cast weights, pad fc4/fc5/fc6 to 128-lane interfaces, pack biases.

    Call ONCE and reuse the result; do not re-pack per forward call.
    """
    (w1, b1), (w2, b2), (w3, b3), (w4, b4), (w5, b5), (w6, b6) = params
    w1_p = w1.astype(jnp.bfloat16)                                     # (112, 512)
    w2_p = w2.astype(jnp.bfloat16)                                     # (512, 512)
    w3_p = w3.astype(jnp.bfloat16)                                     # (512, 256)
    w4_p = jnp.zeros((256, N4_PAD), jnp.bfloat16).at[:, :64].set(w4.astype(jnp.bfloat16))
    w5_p = jnp.zeros((N4_PAD, N5_PAD), jnp.bfloat16).at[:64, :16].set(w5.astype(jnp.bfloat16))
    w6_p = jnp.zeros((N5_PAD, D_OUT), jnp.bfloat16).at[:16, :].set(w6.astype(jnp.bfloat16))
    bpack = jnp.zeros((8, 512), jnp.float32)
    for i, b in enumerate([b1, b2, b3, b4, b5, b6]):
        bpack = bpack.at[i, :b.shape[0]].set(b)
    return (w1_p, w2_p, w3_p, w4_p, w5_p, w6_p, bpack)


def _tiling(B):
    """Pick (tile_b, padded_B). >=2 grid steps when possible (v7x megacore)."""
    B8 = ((B + 7) // 8) * 8
    if B8 > MAX_TILE_B:
        steps = -(-B8 // MAX_TILE_B)
        tile_b = MAX_TILE_B
    elif B8 >= 16:
        steps = 2
        tile_b = ((-(-B8 // 2)) + 7) // 8 * 8
    else:
        steps = 1
        tile_b = max(B8, 8)
    return tile_b, steps * tile_b


def net2516_forward(x, packed):
    """x: (B, 112) f32.  packed: result of pack_params().  Returns (B, 2) f32."""
    w1_p, w2_p, w3_p, w4_p, w5_p, w6_p, bpack = packed
    B = x.shape[0]
    tile_b, b_pad = _tiling(B)
    if b_pad != B:
        x_in = jnp.zeros((b_pad, D_IN), x.dtype).at[:B, :].set(x)
    else:
        x_in = x

    flops_per_row = 2 * (D_IN * 512 + 512 * 512 + 512 * 256
                         + 256 * N4_PAD + N4_PAD * N5_PAD + N5_PAD * D_OUT)
    weight_bytes = 2 * (D_IN * 512 + 512 * 512 + 512 * 256
                        + 256 * N4_PAD + N4_PAD * N5_PAD + N5_PAD * D_OUT) + 8 * 512 * 4
    cost = pl.CostEstimate(
        flops=flops_per_row * b_pad,
        transcendentals=0,
        bytes_accessed=b_pad * (D_IN * 4 + D_OUT * 4) + weight_bytes,
    )

    out = pl.pallas_call(
        mlp_kernel,
        out_shape=jax.ShapeDtypeStruct((b_pad, D_OUT), jnp.float32),
        grid=(b_pad // tile_b,),
        in_specs=[
            pl.BlockSpec((tile_b, D_IN), lambda i: (i, 0)),    # x: row-tiled, f32
            pl.BlockSpec((D_IN, 512), lambda i: (0, 0)),       # weights stay VMEM-resident
            pl.BlockSpec((512, 512), lambda i: (0, 0)),
            pl.BlockSpec((512, 256), lambda i: (0, 0)),
            pl.BlockSpec((256, N4_PAD), lambda i: (0, 0)),
            pl.BlockSpec((N4_PAD, N5_PAD), lambda i: (0, 0)),
            pl.BlockSpec((N5_PAD, D_OUT), lambda i: (0, 0)),
            pl.BlockSpec((8, 512), lambda i: (0, 0)),          # packed biases
        ],
        out_specs=pl.BlockSpec((tile_b, D_OUT), lambda i: (i, 0)),
        compiler_params=pltpu.CompilerParams(
            dimension_semantics=("parallel",)),
        cost_estimate=cost,
    )(x_in, w1_p, w2_p, w3_p, w4_p, w5_p, w6_p, bpack)

    return out[:B, :] if b_pad != B else out


def reference_forward(x, params):
    """Pure-JAX reference mirroring the kernel's bf16-weight / f32-accumulate math."""
    h = x.astype(jnp.bfloat16)
    n = len(params)
    for i, (w, b) in enumerate(params):
        y = jnp.dot(h, w.astype(jnp.bfloat16),
                    preferred_element_type=jnp.float32) + b
        if i < n - 1:
            h = jnp.maximum(y, 0.0).astype(jnp.bfloat16)
        else:
            h = y
    return h


if __name__ == "__main__":
    key = jax.random.PRNGKey(0)
    key, kx = jax.random.split(key)

    B = 8
    x = jax.random.normal(kx, (B, D_IN), jnp.float32)
    params = init_params(key)
    packed = pack_params(params)          # packed once, reused every call

    out = jax.block_until_ready(net2516_forward(x, packed))
    ref = reference_forward(x, params)

    assert out.shape == (B, 2), out.shape
    assert jnp.allclose(out, ref, atol=1e-2, rtol=1e-2), "mismatch vs reference"
    print("KERNEL_OK")
</pallas_src>

<mosaic_0001>
module attributes {stable_mosaic.version = 11 : i64} {
  func.func @mlp_kernel(%arg0: i32, %arg1: memref<8x112xf32, #tpu.memory_space<vmem>>, %arg2: memref<112x512xbf16, #tpu.memory_space<vmem>>, %arg3: memref<512x512xbf16, #tpu.memory_space<vmem>>, %arg4: memref<512x256xbf16, #tpu.memory_space<vmem>>, %arg5: memref<256x128xbf16, #tpu.memory_space<vmem>>, %arg6: memref<128x128xbf16, #tpu.memory_space<vmem>>, %arg7: memref<128x2xbf16, #tpu.memory_space<vmem>>, %arg8: memref<8x512xf32, #tpu.memory_space<vmem>>, %arg9: memref<8x2xf32, #tpu.memory_space<vmem>>) attributes {dimension_semantics = [#tpu.dimension_semantics<parallel>], iteration_bounds = array<i64: 1>, scalar_prefetch = 0 : i64, scratch_operands = 0 : i64, tpu.core_type = #tpu.core_type<tc>, window_params = [{transform_indices = @transform_0, window_bounds = array<i64: 8, 112>}, {pipeline_mode = #tpu.pipeline_mode<synchronous>, transform_indices = @transform_1, window_bounds = array<i64: 112, 512>}, {pipeline_mode = #tpu.pipeline_mode<synchronous>, transform_indices = @transform_2, window_bounds = array<i64: 512, 512>}, {pipeline_mode = #tpu.pipeline_mode<synchronous>, transform_indices = @transform_3, window_bounds = array<i64: 512, 256>}, {pipeline_mode = #tpu.pipeline_mode<synchronous>, transform_indices = @transform_4, window_bounds = array<i64: 256, 128>}, {pipeline_mode = #tpu.pipeline_mode<synchronous>, transform_indices = @transform_5, window_bounds = array<i64: 128, 128>}, {pipeline_mode = #tpu.pipeline_mode<synchronous>, transform_indices = @transform_6, window_bounds = array<i64: 128, 2>}, {pipeline_mode = #tpu.pipeline_mode<synchronous>, transform_indices = @transform_7, window_bounds = array<i64: 8, 512>}, {transform_indices = @transform_8, window_bounds = array<i64: 8, 2>}]} {
    %c0 = arith.constant 0 : index
    %c0_0 = arith.constant 0 : index
    %0 = vector.load %arg8[%c0, %c0_0] : memref<8x512xf32, #tpu.memory_space<vmem>>, vector<8x512xf32>
    %c0_1 = arith.constant 0 : index
    %c0_2 = arith.constant 0 : index
    %1 = vector.load %arg1[%c0_1, %c0_2] : memref<8x112xf32, #tpu.memory_space<vmem>>, vector<8x112xf32>
    %2 = arith.truncf %1 : vector<8x112xf32> to vector<8x112xbf16>
    %c0_3 = arith.constant 0 : index
    %c0_4 = arith.constant 0 : index
    %3 = vector.load %arg2[%c0_3, %c0_4] : memref<112x512xbf16, #tpu.memory_space<vmem>>, vector<112x512xbf16>
    %cst = arith.constant dense<0.000000e+00> : vector<8x512xf32>
    %4 = tpu.matmul %2, %3, %cst {dimension_numbers = #tpu.dot_dimension_numbers<[1], [0], [0], [1], [0, 0, 1, 1], [], []>} : vector<8x112xbf16>, vector<112x512xbf16>, vector<8x512xf32> -> vector<8x512xf32>
    %5 = vector.extract_strided_slice %0 {offsets = [0, 0], sizes = [1, 512], strides = [1, 1]} : vector<8x512xf32> to vector<1x512xf32>
    %6 = vector.broadcast %5 : vector<1x512xf32> to vector<8x512xf32>
    %7 = arith.addf %4, %6 : vector<8x512xf32>
    %cst_5 = arith.constant 0.000000e+00 : f32
    %8 = vector.broadcast %cst_5 : f32 to vector<8x512xf32>
    %9 = arith.maximumf %7, %8 : vector<8x512xf32>
    %10 = arith.truncf %9 : vector<8x512xf32> to vector<8x512xbf16>
    %c0_6 = arith.constant 0 : index
    %c0_7 = arith.constant 0 : index
    %11 = vector.load %arg3[%c0_6, %c0_7] : memref<512x512xbf16, #tpu.memory_space<vmem>>, vector<512x512xbf16>
    %cst_8 = arith.constant dense<0.000000e+00> : vector<8x512xf32>
    %12 = tpu.matmul %10, %11, %cst_8 {dimension_numbers = #tpu.dot_dimension_numbers<[1], [0], [0], [1], [0, 0, 1, 1], [], []>} : vector<8x512xbf16>, vector<512x512xbf16>, vector<8x512xf32> -> vector<8x512xf32>
    %13 = vector.extract_strided_slice %0 {offsets = [1, 0], sizes = [1, 512], strides = [1, 1]} : vector<8x512xf32> to vector<1x512xf32>
    %14 = vector.broadcast %13 : vector<1x512xf32> to vector<8x512xf32>
    %15 = arith.addf %12, %14 : vector<8x512xf32>
    %cst_9 = arith.constant 0.000000e+00 : f32
    %16 = vector.broadcast %cst_9 : f32 to vector<8x512xf32>
    %17 = arith.maximumf %15, %16 : vector<8x512xf32>
    %18 = arith.truncf %17 : vector<8x512xf32> to vector<8x512xbf16>
    %c0_10 = arith.constant 0 : index
    %c0_11 = arith.constant 0 : index
    %19 = vector.load %arg4[%c0_10, %c0_11] : memref<512x256xbf16, #tpu.memory_space<vmem>>, vector<512x256xbf16>
    %cst_12 = arith.constant dense<0.000000e+00> : vector<8x256xf32>
    %20 = tpu.matmul %18, %19, %cst_12 {dimension_numbers = #tpu.dot_dimension_numbers<[1], [0], [0], [1], [0, 0, 1, 1], [], []>} : vector<8x512xbf16>, vector<512x256xbf16>, vector<8x256xf32> -> vector<8x256xf32>
    %21 = vector.extract_strided_slice %0 {offsets = [2, 0], sizes = [1, 256], strides = [1, 1]} : vector<8x512xf32> to vector<1x256xf32>
    %22 = vector.broadcast %21 : vector<1x256xf32> to vector<8x256xf32>
    %23 = arith.addf %20, %22 : vector<8x256xf32>
    %cst_13 = arith.constant 0.000000e+00 : f32
    %24 = vector.broadcast %cst_13 : f32 to vector<8x256xf32>
    %25 = arith.maximumf %23, %24 : vector<8x256xf32>
    %26 = arith.truncf %25 : vector<8x256xf32> to vector<8x256xbf16>
    %c0_14 = arith.constant 0 : index
    %c0_15 = arith.constant 0 : index
    %27 = vector.load %arg5[%c0_14, %c0_15] : memref<256x128xbf16, #tpu.memory_space<vmem>>, vector<256x128xbf16>
    %cst_16 = arith.constant dense<0.000000e+00> : vector<8x128xf32>
    %28 = tpu.matmul %26, %27, %cst_16 {dimension_numbers = #tpu.dot_dimension_numbers<[1], [0], [0], [1], [0, 0, 1, 1], [], []>} : vector<8x256xbf16>, vector<256x128xbf16>, vector<8x128xf32> -> vector<8x128xf32>
    %29 = vector.extract_strided_slice %0 {offsets = [3, 0], sizes = [1, 128], strides = [1, 1]} : vector<8x512xf32> to vector<1x128xf32>
    %30 = vector.broadcast %29 : vector<1x128xf32> to vector<8x128xf32>
    %31 = arith.addf %28, %30 : vector<8x128xf32>
    %cst_17 = arith.constant 0.000000e+00 : f32
    %32 = vector.broadcast %cst_17 : f32 to vector<8x128xf32>
    %33 = arith.maximumf %31, %32 : vector<8x128xf32>
    %34 = arith.truncf %33 : vector<8x128xf32> to vector<8x128xbf16>
    %c0_18 = arith.constant 0 : index
    %c0_19 = arith.constant 0 : index
    %35 = vector.load %arg6[%c0_18, %c0_19] : memref<128x128xbf16, #tpu.memory_space<vmem>>, vector<128x128xbf16>
    %cst_20 = arith.constant dense<0.000000e+00> : vector<8x128xf32>
    %36 = tpu.matmul %34, %35, %cst_20 {dimension_numbers = #tpu.dot_dimension_numbers<[1], [0], [0], [1], [0, 0, 1, 1], [], []>} : vector<8x128xbf16>, vector<128x128xbf16>, vector<8x128xf32> -> vector<8x128xf32>
    %37 = vector.extract_strided_slice %0 {offsets = [4, 0], sizes = [1, 128], strides = [1, 1]} : vector<8x512xf32> to vector<1x128xf32>
    %38 = vector.broadcast %37 : vector<1x128xf32> to vector<8x128xf32>
    %39 = arith.addf %36, %38 : vector<8x128xf32>
    %cst_21 = arith.constant 0.000000e+00 : f32
    %40 = vector.broadcast %cst_21 : f32 to vector<8x128xf32>
    %41 = arith.maximumf %39, %40 : vector<8x128xf32>
    %42 = arith.truncf %41 : vector<8x128xf32> to vector<8x128xbf16>
    %c0_22 = arith.constant 0 : index
    %c0_23 = arith.constant 0 : index
    %43 = vector.load %arg7[%c0_22, %c0_23] : memref<128x2xbf16, #tpu.memory_space<vmem>>, vector<128x2xbf16>
    %cst_24 = arith.constant dense<0.000000e+00> : vector<8x2xf32>
    %44 = tpu.matmul %42, %43, %cst_24 {dimension_numbers = #tpu.dot_dimension_numbers<[1], [0], [0], [1], [0, 0, 1, 1], [], []>} : vector<8x128xbf16>, vector<128x2xbf16>, vector<8x2xf32> -> vector<8x2xf32>
    %45 = vector.extract_strided_slice %0 {offsets = [5, 0], sizes = [1, 2], strides = [1, 1]} : vector<8x512xf32> to vector<1x2xf32>
    %46 = vector.broadcast %45 : vector<1x2xf32> to vector<8x2xf32>
    %47 = arith.addf %44, %46 : vector<8x2xf32>
    %c0_25 = arith.constant 0 : index
    %c0_26 = arith.constant 0 : index
    %48 = vector.load %arg9[%c0_25, %c0_26] : memref<8x2xf32, #tpu.memory_space<vmem>>, vector<8x2xf32>
    tpu.vector_store %arg9[%c0_25, %c0_26], %47 {strides = array<i32>} : memref<8x2xf32, #tpu.memory_space<vmem>>, vector<8x2xf32>,
    return
  }
  func.func @transform_0(%arg0: i32) -> (i32, i32) {
    %c0_i32 = arith.constant 0 : i32
    %c0_i32_0 = arith.constant 0 : i32
    return %arg0, %c0_i32 : i32, i32
  }
  func.func @transform_1(%arg0: i32) -> (i32, i32) {
    %c0_i32 = arith.constant 0 : i32
    %c0_i32_0 = arith.constant 0 : i32
    %c0_i32_1 = arith.constant 0 : i32
    return %c0_i32, %c0_i32_0 : i32, i32
  }
  func.func @transform_2(%arg0: i32) -> (i32, i32) {
    %c0_i32 = arith.constant 0 : i32
    %c0_i32_0 = arith.constant 0 : i32
    %c0_i32_1 = arith.constant 0 : i32
    return %c0_i32, %c0_i32_0 : i32, i32
  }
  func.func @transform_3(%arg0: i32) -> (i32, i32) {
    %c0_i32 = arith.constant 0 : i32
    %c0_i32_0 = arith.constant 0 : i32
    %c0_i32_1 = arith.constant 0 : i32
    return %c0_i32, %c0_i32_0 : i32, i32
  }
  func.func @transform_4(%arg0: i32) -> (i32, i32) {
    %c0_i32 = arith.constant 0 : i32
    %c0_i32_0 = arith.constant 0 : i32
    %c0_i32_1 = arith.constant 0 : i32
    return %c0_i32, %c0_i32_0 : i32, i32
  }
  func.func @transform_5(%arg0: i32) -> (i32, i32) {
    %c0_i32 = arith.constant 0 : i32
    %c0_i32_0 = arith.constant 0 : i32
    %c0_i32_1 = arith.constant 0 : i32
    return %c0_i32, %c0_i32_0 : i32, i32
  }
  func.func @transform_6(%arg0: i32) -> (i32, i32) {
    %c0_i32 = arith.constant 0 : i32
    %c0_i32_0 = arith.constant 0 : i32
    %c0_i32_1 = arith.constant 0 : i32
    return %c0_i32, %c0_i32_0 : i32, i32
  }
  func.func @transform_7(%arg0: i32) -> (i32, i32) {
    %c0_i32 = arith.constant 0 : i32
    %c0_i32_0 = arith.constant 0 : i32
    %c0_i32_1 = arith.constant 0 : i32
    return %c0_i32, %c0_i32_0 : i32, i32
  }
  func.func @transform_8(%arg0: i32) -> (i32, i32) {
    %c0_i32 = arith.constant 0 : i32
    %c0_i32_0 = arith.constant 0 : i32
    return %arg0, %c0_i32 : i32, i32
  }
}

</mosaic_0001>

<llo_original>
// kernel: tpu_custom_call.1
$region0: #{tpu_custom_call.1}
  #allocation0 [shape = 'u32[]', space=smem, size = 0x4, offset = 0x4, fixed_abs, tag = 'smem constant byte address 0x4 - core index']
  #allocation1 [shape = 'u32[144,128]{1,0:T(1,128)}', space=vmem, size = 0x12000, scoped, tag = 'internal scratch']
  %s0 = inlined_call_operand.vmem [shape: f32[8,112], index: 0, kind: input, shape index: {}]
  %s1 = inlined_call_operand.hbm [shape: bf16[112,512], index: 1, kind: input, shape index: {}]
  %s2 = inlined_call_operand.hbm [shape: bf16[512,512], index: 2, kind: input, shape index: {}]
  %s3 = inlined_call_operand.hbm [shape: bf16[512,256], index: 3, kind: input, shape index: {}]
  %s4 = inlined_call_operand.hbm [shape: bf16[256,128], index: 4, kind: input, shape index: {}]
  %s5 = inlined_call_operand.vmem [shape: bf16[128,128], index: 5, kind: input, shape index: {}]
  %s6 = inlined_call_operand.vmem [shape: bf16[128,2], index: 6, kind: input, shape index: {}]
  %s7 = inlined_call_operand.hbm [shape: f32[8,512], index: 7, kind: input, shape index: {}]
  %s8 = inlined_call_operand.vmem [shape: f32[8,2], index: 8, kind: output, shape index: {}]
  %s9 = sld [smem:[#allocation0]]
  $region62: #{tpu_custom_call.1} parent=0
    _
  %s11 = ssub.s32 1, %s9
  %s12 = scalar_select 0, %s11, %s9
  $region1: #{tpu_custom_call.1} parent=0
    #allocation2 [shape = 'u8[114688]{0}', space=vmem, size = 0x1c000, scoped, tag = 'input window, operand 1, single buffered']
    #allocation3 [shape = 's32[1]{0}', space=sflag, size = 0x4, scoped, tag = 'scoped memory for tpu_custom_call.1']
    #allocation4 [shape = 'u8[524288]{0}', space=vmem, size = 0x80000, scoped, tag = 'input window, operand 2, single buffered']
    #allocation5 [shape = 's32[1]{0}', space=sflag, size = 0x4, scoped, tag = 'scoped memory for tpu_custom_call.1']
    #allocation6 [shape = 'u8[262144]{0}', space=vmem, size = 0x40000, scoped, tag = 'input window, operand 3, single buffered']
    #allocation7 [shape = 'u8[65536]{0}', space=vmem, size = 0x10000, scoped, tag = 'input window, operand 4, single buffered']
    #allocation8 [shape = 's32[1]{0}', space=sflag, size = 0x4, scoped, tag = 'scoped memory for tpu_custom_call.1']
    #allocation9 [shape = 'u8[16384]{0}', space=vmem, size = 0x4000, scoped, tag = 'input window, operand 7, single buffered']
    %13 = vsyncpa [#allocation3], 0
    %14 = vsyncpa [#allocation5], 0
    %15 = vsyncpa [#allocation8], 0
    // Predicated region
    $region2: #{tpu_custom_call.1} parent=1 // pred_check
      _
    $region3: #{tpu_custom_call.1} parent=1 // pred_check_branch
      %17 = sbr.rel (0) target = $region5
    $region4: #{tpu_custom_call.1} parent=1 // pred_region
      _
    $region5: #{tpu_custom_call.1} parent=1 // pred_fallthru
      _
    // Predicated region
    $region6: #{tpu_custom_call.1} parent=1 // pred_check
      _
    $region7: #{tpu_custom_call.1} parent=1 // pred_check_branch
      %19 = sbr.rel (0) target = $region9
    $region8: #{tpu_custom_call.1} parent=1 // pred_region
      %s21 = ssub.s32 3584, 3584
      %22 = vsyncadd [#allocation3], %s21
      %s23 = sshll.u32 [#allocation2], 4
      %s24 = int_to_ptr.vmem [resolvable:$true] %s23
      %29 = dma.hbm_to_vmem [thread:$0]  %s1, 3584, %s24, [#allocation3], 256, 256, 16
    $region9: #{tpu_custom_call.1} parent=1 // pred_fallthru
      _
    // Predicated region
    $region10: #{tpu_custom_call.1} parent=1 // pred_check
      _
    $region11: #{tpu_custom_call.1} parent=1 // pred_check_branch
      %31 = sbr.rel (0) target = $region13
    $region12: #{tpu_custom_call.1} parent=1 // pred_region
      %s33 = ssub.s32 16384, 16384
      %34 = vsyncadd [#allocation5], %s33
      %s35 = sshll.u32 [#allocation4], 4
      %s36 = int_to_ptr.vmem [resolvable:$true] %s35
      %41 = dma.hbm_to_vmem [thread:$0]  %s2, 16384, %s36, [#allocation5], 256, 256, 16
    $region13: #{tpu_custom_call.1} parent=1 // pred_fallthru
      _
    // Predicated region
    $region14: #{tpu_custom_call.1} parent=1 // pred_check
      _
    $region15: #{tpu_custom_call.1} parent=1 // pred_check_branch
      %43 = sbr.rel (0) target = $region17
    $region16: #{tpu_custom_call.1} parent=1 // pred_region
      %s45 = ssub.s32 8192, 8192
      %46 = vsyncadd [#allocation5], %s45
      %s47 = sshll.u32 [#allocation6], 4
      %s48 = int_to_ptr.vmem [resolvable:$true] %s47
      %53 = dma.hbm_to_vmem [thread:$0]  %s3, 8192, %s48, [#allocation5], 128, 128, 8
    $region17: #{tpu_custom_call.1} parent=1 // pred_fallthru
      _
    // Predicated region
    $region18: #{tpu_custom_call.1} parent=1 // pred_check
      _
    $region19: #{tpu_custom_call.1} parent=1 // pred_check_branch
      %55 = sbr.rel (0) target = $region21
    $region20: #{tpu_custom_call.1} parent=1 // pred_region
      %s57 = ssub.s32 2048, 2048
      %58 = vsyncadd [#allocation8], %s57
      %s59 = sshll.u32 [#allocation7], 4
      %s60 = int_to_ptr.vmem [resolvable:$true] %s59
      %65 = dma.hbm_to_vmem [thread:$0]  %s4, 2048, %s60, [#allocation8], 64, 64, 4
    $region21: #{tpu_custom_call.1} parent=1 // pred_fallthru
      _
    // Predicated region
    $region22: #{tpu_custom_call.1} parent=1 // pred_check
      _
    $region23: #{tpu_custom_call.1} parent=1 // pred_check_branch
      %67 = sbr.rel (0) target = $region25
    $region24: #{tpu_custom_call.1} parent=1 // pred_region
      _
    $region25: #{tpu_custom_call.1} parent=1 // pred_fallthru
      _
    // Predicated region
    $region26: #{tpu_custom_call.1} parent=1 // pred_check
      _
    $region27: #{tpu_custom_call.1} parent=1 // pred_check_branch
      %69 = sbr.rel (0) target = $region29
    $region28: #{tpu_custom_call.1} parent=1 // pred_region
      _
    $region29: #{tpu_custom_call.1} parent=1 // pred_fallthru
      _
    // Predicated region
    $region30: #{tpu_custom_call.1} parent=1 // pred_check
      _
    $region31: #{tpu_custom_call.1} parent=1 // pred_check_branch
      %71 = sbr.rel (0) target = $region33
    $region32: #{tpu_custom_call.1} parent=1 // pred_region
      %s73 = ssub.s32 512, 512
      %74 = vsyncadd [#allocation8], %s73
      %s76 = sshll.u32 [#allocation9], 4
      %s77 = int_to_ptr.vmem [resolvable:$true] %s76
      %79 = dma.hbm_to_vmem [thread:$0]  %s7, 512, %s77, [#allocation8]
    $region33: #{tpu_custom_call.1} parent=1 // pred_fallthru
      _
    // Predicated region
    $region34: #{tpu_custom_call.1} parent=1 // pred_check
      _
    $region35: #{tpu_custom_call.1} parent=1 // pred_check_branch
      %81 = sbr.rel (0) target = $region37
    $region36: #{tpu_custom_call.1} parent=1 // pred_region
      %82 = dma.done [#allocation3], 3584
    $region37: #{tpu_custom_call.1} parent=1 // pred_fallthru
      _
    // Predicated region
    $region38: #{tpu_custom_call.1} parent=1 // pred_check
      _
    $region39: #{tpu_custom_call.1} parent=1 // pred_check_branch
      %84 = sbr.rel (0) target = $region41
    $region40: #{tpu_custom_call.1} parent=1 // pred_region
      %85 = dma.done [#allocation5], 16384
    $region41: #{tpu_custom_call.1} parent=1 // pred_fallthru
      _
    // Predicated region
    $region42: #{tpu_custom_call.1} parent=1 // pred_check
      _
    $region43: #{tpu_custom_call.1} parent=1 // pred_check_branch
      %87 = sbr.rel (0) target = $region45
    $region44: #{tpu_custom_call.1} parent=1 // pred_region
      %88 = dma.done [#allocation5], 8192
    $region45: #{tpu_custom_call.1} parent=1 // pred_fallthru
      _
    // Predicated region
    $region46: #{tpu_custom_call.1} parent=1 // pred_check
      _
    $region47: #{tpu_custom_call.1} parent=1 // pred_check_branch
      %90 = sbr.rel (0) target = $region49
    $region48: #{tpu_custom_call.1} parent=1 // pred_region
      %91 = dma.done [#allocation8], 2048
    $region49: #{tpu_custom_call.1} parent=1 // pred_fallthru
      _
    // Predicated region
    $region50: #{tpu_custom_call.1} parent=1 // pred_check
      _
    $region51: #{tpu_custom_call.1} parent=1 // pred_check_branch
      %93 = sbr.rel (0) target = $region53
    $region52: #{tpu_custom_call.1} parent=1 // pred_region
      %94 = dma.done [#allocation8], 512
    $region53: #{tpu_custom_call.1} parent=1 // pred_fallthru
      _
    %v96 = vld [vmem:[#allocation9] sm:$0xff]
    %v97 = vld [vmem:[#allocation9 + $0x8] sm:$0xff]
    %v98 = vld [vmem:[#allocation9 + $0x10] sm:$0xff]
    %v99 = vld [vmem:[#allocation9 + $0x18] sm:$0xff]
    %v100 = vld [vmem:[%s0] sm:$0xff]
    %v101 = vpack.c.bf16 %v100, %v100
    %v102 = vld [vmem:[#allocation2] sm:$0xff]
    %v103 = vld [vmem:[#allocation2 + $0x8] sm:$0xff]
    %v104 = vld [vmem:[#allocation2 + $0x10] sm:$0xff]
    %v105 = vld [vmem:[#allocation2 + $0x18] sm:$0xff]
    %v106 = vld [vmem:[#allocation2 + $0x20] sm:$0xff]
    %v107 = vld [vmem:[#allocation2 + $0x28] sm:$0xff]
    %v108 = vld [vmem:[#allocation2 + $0x30] sm:$0xff]
    %v109 = vld [vmem:[#allocation2 + $0x38] sm:$0xff]
    %v110 = vld [vmem:[#allocation2 + $0x40] sm:$0xff]
    %v111 = vld [vmem:[#allocation2 + $0x48] sm:$0xff]
    %v112 = vld [vmem:[#allocation2 + $0x50] sm:$0xff]
    %v113 = vld [vmem:[#allocation2 + $0x58] sm:$0xff]
    %v114 = vld [vmem:[#allocation2 + $0x60] sm:$0xff]
    %v115 = vld [vmem:[#allocation2 + $0x68] sm:$0xff]
    %v116 = vld [vmem:[#allocation2 + $0x70] sm:$0xff]
    %v117 = vld [vmem:[#allocation2 + $0x78] sm:$0xff]
    %v118 = vld [vmem:[#allocation2 + $0x80] sm:$0xff]
    %v119 = vld [vmem:[#allocation2 + $0x88] sm:$0xff]
    %v120 = vld [vmem:[#allocation2 + $0x90] sm:$0xff]
    %v121 = vld [vmem:[#allocation2 + $0x98] sm:$0xff]
    %v122 = vld [vmem:[#allocation2 + $0xa0] sm:$0xff]
    %v123 = vld [vmem:[#allocation2 + $0xa8] sm:$0xff]
    %v124 = vld [vmem:[#allocation2 + $0xb0] sm:$0xff]
    %v125 = vld [vmem:[#allocation2 + $0xb8] sm:$0xff]
    %v126 = vld [vmem:[#allocation2 + $0xc0] sm:$0xff]
    %v127 = vld [vmem:[#allocation2 + $0xc8] sm:$0xff]
    %v128 = vld [vmem:[#allocation2 + $0xd0] sm:$0xff]
    %v129 = vld [vmem:[#allocation2 + $0xd8] sm:$0xff]
    %v130 = vlaneseq
    %v131 = vshrl.u32 %v130, 7
    %v132 = vsub.s32 0, %v131
    %v133 = vrot.slane %v96, %v132
    %v134 = vlaneseq
    %v135 = vshrl.u32 %v134, 7
    %v136 = vsub.s32 0, %v135
    %v137 = vrot.slane %v97, %v136
    %v138 = vlaneseq
    %v139 = vshrl.u32 %v138, 7
    %v140 = vsub.s32 0, %v139
    %v141 = vrot.slane %v98, %v140
    %v142 = vlaneseq
    %v143 = vshrl.u32 %v142, 7
    %v144 = vsub.s32 0, %v143
    %v145 = vrot.slane %v99, %v144
    %v174 = vunpack.c.l.b16 %v102
    %v175 = vunpack.c.h.b16 %v102
    %v176 = vunpack.c.l.b16 %v103
    %v177 = vunpack.c.h.b16 %v103
    %v178 = vunpack.c.l.b16 %v104
    %v179 = vunpack.c.h.b16 %v104
    %v180 = vunpack.c.l.b16 %v105
    %v181 = vunpack.c.h.b16 %v105
    %v182 = vunpack.c.l.b16 %v106
    %v183 = vunpack.c.h.b16 %v106
    %v184 = vunpack.c.l.b16 %v107
    %v185 = vunpack.c.h.b16 %v107
    %v186 = vunpack.c.l.b16 %v108
    %v187 = vunpack.c.h.b16 %v108
    %v188 = vunpack.c.l.b16 %v109
    %v189 = vunpack.c.h.b16 %v109
    %v190 = vunpack.c.l.b16 %v110
    %v191 = vunpack.c.h.b16 %v110
    %v192 = vunpack.c.l.b16 %v111
    %v193 = vunpack.c.h.b16 %v111
    %v194 = vunpack.c.l.b16 %v112
    %v195 = vunpack.c.h.b16 %v112
    %v196 = vunpack.c.l.b16 %v113
    %v197 = vunpack.c.h.b16 %v113
    %v198 = vunpack.c.l.b16 %v114
    %v199 = vunpack.c.h.b16 %v114
    %v200 = vunpack.c.l.b16 %v115
    %v201 = vunpack.c.h.b16 %v115
    %v202 = vunpack.c.l.b16 %v116
    %v203 = vunpack.c.h.b16 %v116
    %v204 = vunpack.c.l.b16 %v117
    %v205 = vunpack.c.h.b16 %v117
    %v206 = vunpack.c.l.b16 %v118
    %v207 = vunpack.c.h.b16 %v118
    %v208 = vunpack.c.l.b16 %v119
    %v209 = vunpack.c.h.b16 %v119
    %v210 = vunpack.c.l.b16 %v120
    %v211 = vunpack.c.h.b16 %v120
    %v212 = vunpack.c.l.b16 %v121
    %v213 = vunpack.c.h.b16 %v121
    %v214 = vunpack.c.l.b16 %v122
    %v215 = vunpack.c.h.b16 %v122
    %v216 = vunpack.c.l.b16 %v123
    %v217 = vunpack.c.h.b16 %v123
    %v218 = vunpack.c.l.b16 %v124
    %v219 = vunpack.c.h.b16 %v124
    %v220 = vunpack.c.l.b16 %v125
    %v221 = vunpack.c.h.b16 %v125
    %v222 = vunpack.c.l.b16 %v126
    %v223 = vunpack.c.h.b16 %v126
    %v224 = vunpack.c.l.b16 %v127
    %v225 = vunpack.c.h.b16 %v127
    %v226 = vunpack.c.l.b16 %v128
    %v227 = vunpack.c.h.b16 %v128
    %v228 = vunpack.c.l.b16 %v129
    %v229 = vunpack.c.h.b16 %v129
    %v230 = vpack.c.b16 %v178, %v174
    %v231 = vpack.c.b16 %v179, %v175
    %v232 = vpack.c.b16 %v180, %v176
    %v233 = vpack.c.b16 %v181, %v177
    %v234 = vpack.c.b16 %v186, %v182
    %v235 = vpack.c.b16 %v187, %v183
    %v236 = vpack.c.b16 %v188, %v184
    %v237 = vpack.c.b16 %v189, %v185
    %v238 = vpack.c.b16 %v194, %v190
    %v239 = vpack.c.b16 %v195, %v191
    %v240 = vpack.c.b16 %v196, %v192
    %v241 = vpack.c.b16 %v197, %v193
    %v242 = vpack.c.b16 %v202, %v198
    %v243 = vpack.c.b16 %v203, %v199
    %v244 = vpack.c.b16 %v204, %v200
    %v245 = vpack.c.b16 %v205, %v201
    %v246 = vpack.c.b16 %v210, %v206
    %v247 = vpack.c.b16 %v211, %v207
    %v248 = vpack.c.b16 %v212, %v208
    %v249 = vpack.c.b16 %v213, %v209
    %v250 = vpack.c.b16 %v218, %v214
    %v251 = vpack.c.b16 %v219, %v215
    %v252 = vpack.c.b16 %v220, %v216
    %v253 = vpack.c.b16 %v221, %v217
    %v254 = vpack.c.b16 %v226, %v222
    %v255 = vpack.c.b16 %v227, %v223
    %v256 = vpack.c.b16 %v228, %v224
    %v257 = vpack.c.b16 %v229, %v225
    %vm286 = vcmask 916480
    %v288 = vsel %vm286, %v101, 0
    %290 = vmatprep.subr.bf16.mxu0 %v231
    %291 = vmatpush1.bf16.msra.mxu0 %v230
    %292 = vmatprep.subr.bf16.mxu0 %v235
    %293 = vmatpush1.bf16.msra.mxu0 %v234
    %294 = vmatprep.subr.bf16.mxu0 %v239
    %295 = vmatpush1.bf16.msra.mxu0 %v238
    %296 = vmatprep.subr.bf16.mxu0 %v243
    %297 = vmatpush1.bf16.msra.mxu0 %v242
    %298 = vmatprep.subr.bf16.mxu0 %v247
    %299 = vmatpush1.bf16.msra.mxu0 %v246
    %300 = vmatprep.subr.bf16.mxu0 %v251
    %301 = vmatpush1.bf16.msra.mxu0 %v250
    %302 = vmatprep.subr.bf16.mxu0 %v255
    %303 = vmatpush1.bf16.msra.mxu0 %v254
    %304 = vmatprep.subr.bf16.mxu0 0
    %305 = vmatpush1.bf16.msra.mxu0 0
    %306 = vmatprep.subr.bf16.mxu0 0
    %307 = vmatpush1.bf16.msra.mxu0 0
    %308 = vmatprep.subr.bf16.mxu0 0
    %309 = vmatpush1.bf16.msra.mxu0 0
    %310 = vmatprep.subr.bf16.mxu0 0
    %311 = vmatpush1.bf16.msra.mxu0 0
    %312 = vmatprep.subr.bf16.mxu0 0
    %313 = vmatpush1.bf16.msra.mxu0 0
    %314 = vmatprep.subr.bf16.mxu0 0
    %315 = vmatpush1.bf16.msra.mxu0 0
    %316 = vmatprep.subr.bf16.mxu0 0
    %317 = vmatpush1.bf16.msra.mxu0 0
    %318 = vmatprep.subr.bf16.mxu0 0
    %319 = vmatpush1.bf16.msra.mxu0 0
    %320 = vmatprep.subr.bf16.mxu0 0
    %321 = vmatpush1.bf16.msra.mxu0 0
    %322 = vmatprep.mubr.bf16.mxu0 0
    %323 = vmatmul.mubr.bf16.gmra.mrb[0].mxu0 %v288
    %v324 = vpop.f32.mrb[0].mxu0
    %v325 = vadd.f32 %v133, %v324
    %v326 = vpop.f32.mrb[0].mxu0
    %v327 = vadd.f32 %v137, %v326
    %v328 = vpop.f32.mrb[0].mxu0
    %v329 = vpop.f32.mrb[0].mxu0
    %330 = vdwg.mxu0
    %331 = vmatprep.subr.bf16.mxu0 %v233
    %332 = vmatpush1.bf16.msra.mxu0 %v232
    %333 = vmatprep.subr.bf16.mxu0 %v237
    %334 = vmatpush1.bf16.msra.mxu0 %v236
    %335 = vmatprep.subr.bf16.mxu0 %v241
    %336 = vmatpush1.bf16.msra.mxu0 %v240
    %337 = vmatprep.subr.bf16.mxu0 %v245
    %338 = vmatpush1.bf16.msra.mxu0 %v244
    %339 = vmatprep.subr.bf16.mxu0 %v249
    %340 = vmatpush1.bf16.msra.mxu0 %v248
    %341 = vmatprep.subr.bf16.mxu0 %v253
    %342 = vmatpush1.bf16.msra.mxu0 %v252
    %343 = vmatprep.subr.bf16.mxu0 %v257
    %344 = vmatpush1.bf16.msra.mxu0 %v256
    %345 = vmatprep.subr.bf16.mxu0 0
    %346 = vmatpush1.bf16.msra.mxu0 0
    %347 = vmatprep.subr.bf16.mxu0 0
    %348 = vmatpush1.bf16.msra.mxu0 0
    %349 = vmatprep.subr.bf16.mxu0 0
    %350 = vmatpush1.bf16.msra.mxu0 0
    %351 = vmatprep.subr.bf16.mxu0 0
    %352 = vmatpush1.bf16.msra.mxu0 0
    %353 = vmatprep.subr.bf16.mxu0 0
    %354 = vmatpush1.bf16.msra.mxu0 0
    %355 = vmatprep.subr.bf16.mxu0 0
    %356 = vmatpush1.bf16.msra.mxu0 0
    %357 = vmatprep.subr.bf16.mxu0 0
    %358 = vmatpush1.bf16.msra.mxu0 0
    %359 = vmatprep.subr.bf16.mxu0 0
    %360 = vmatpush1.bf16.msra.mxu0 0
    %361 = vmatprep.subr.bf16.mxu0 0
    %362 = vmatpush1.bf16.msra.mxu0 0
    %363 = vmatprep.mubr.bf16.mxu0 0
    %364 = vmatmul.mubr.bf16.gmra.mrb[0].mxu0 %v288
    %v365 = vpop.f32.mrb[0].mxu0
    %v366 = vadd.f32 %v141, %v365
    %v367 = vpop.f32.mrb[0].mxu0
    %v368 = vadd.f32 %v145, %v367
    %v369 = vpop.f32.mrb[0].mxu0
    %v370 = vpop.f32.mrb[0].mxu0
    %371 = vdwg.mxu0
    %v372 = vmax.f32 %v325, 0.0
    %v373 = vmax.f32 %v327, 0.0
    %v374 = vmax.f32 %v366, 0.0
    %v375 = vmax.f32 %v368, 0.0
    %v376 = vpack.c.bf16 %v372, %v372
    %v377 = vpack.c.bf16 %v373, %v373
    %v378 = vpack.c.bf16 %v374, %v374
    %v379 = vpack.c.bf16 %v375, %v375
    %v380 = vld [vmem:[#allocation4] sm:$0xff]
    %v381 = vld [vmem:[#allocation4 + $0x8] sm:$0xff]
    %v382 = vld [vmem:[#allocation4 + $0x10] sm:$0xff]
    %v383 = vld [vmem:[#allocation4 + $0x18] sm:$0xff]
    %v384 = vld [vmem:[#allocation4 + $0x20] sm:$0xff]
    %v385 = vld [vmem:[#allocation4 + $0x28] sm:$0xff]
    %v386 = vld [vmem:[#allocation4 + $0x30] sm:$0xff]
    %v387 = vld [vmem:[#allocation4 + $0x38] sm:$0xff]
    %v388 = vld [vmem:[#allocation4 + $0x40] sm:$0xff]
    %v389 = vld [vmem:[#allocation4 + $0x48] sm:$0xff]
    %v390 = vld [vmem:[#allocation4 + $0x50] sm:$0xff]
    %v391 = vld [vmem:[#allocation4 + $0x58] sm:$0xff]
    %v392 = vld [vmem:[#allocation4 + $0x60] sm:$0xff]
    %v393 = vld [vmem:[#allocation4 + $0x68] sm:$0xff]
    %v394 = vld [vmem:[#allocation4 + $0x70] sm:$0xff]
    %v395 = vld [vmem:[#allocation4 + $0x78] sm:$0xff]
    %v396 = vld [vmem:[#allocation4 + $0x80] sm:$0xff]
    %v397 = vld [vmem:[#allocation4 + $0x88] sm:$0xff]
    %v398 = vld [vmem:[#allocation4 + $0x90] sm:$0xff]
    %v399 = vld [vmem:[#allocation4 + $0x98] sm:$0xff]
    %v400 = vld [vmem:[#allocation4 + $0xa0] sm:$0xff]
    %v401 = vld [vmem:[#allocation4 + $0xa8] sm:$0xff]
    %v402 = vld [vmem:[#allocation4 + $0xb0] sm:$0xff]
    %v403 = vld [vmem:[#allocation4 + $0xb8] sm:$0xff]
    %v404 = vld [vmem:[#allocation4 + $0xc0] sm:$0xff]
    %v405 = vld [vmem:[#allocation4 + $0xc8] sm:$0xff]
    %v406 = vld [vmem:[#allocation4 + $0xd0] sm:$0xff]
    %v407 = vld [vmem:[#allocation4 + $0xd8] sm:$0xff]
    %v408 = vld [vmem:[#allocation4 + $0xe0] sm:$0xff]
    %v409 = vld [vmem:[#allocation4 + $0xe8] sm:$0xff]
    %v410 = vld [vmem:[#allocation4 + $0xf0] sm:$0xff]
    %v411 = vld [vmem:[#allocation4 + $0xf8] sm:$0xff]
    %v412 = vld [vmem:[#allocation4 + $0x100] sm:$0xff]
    %v413 = vld [vmem:[#allocation4 + $0x108] sm:$0xff]
    %v414 = vld [vmem:[#allocation4 + $0x110] sm:$0xff]
    %v415 = vld [vmem:[#allocation4 + $0x118] sm:$0xff]
    %v416 = vld [vmem:[#allocation4 + $0x120] sm:$0xff]
    %v417 = vld [vmem:[#allocation4 + $0x128] sm:$0xff]
    %v418 = vld [vmem:[#allocation4 + $0x130] sm:$0xff]
    %v419 = vld [vmem:[#allocation4 + $0x138] sm:$0xff]
    %v420 = vld [vmem:[#allocation4 + $0x140] sm:$0xff]
    %v421 = vld [vmem:[#allocation4 + $0x148] sm:$0xff]
    %v422 = vld [vmem:[#allocation4 + $0x150] sm:$0xff]
    %v423 = vld [vmem:[#allocation4 + $0x158] sm:$0xff]
    %v424 = vld [vmem:[#allocation4 + $0x160] sm:$0xff]
    %v425 = vld [vmem:[#allocation4 + $0x168] sm:$0xff]
    %v426 = vld [vmem:[#allocation4 + $0x170] sm:$0xff]
    %v427 = vld [vmem:[#allocation4 + $0x178] sm:$0xff]
    %v428 = vld [vmem:[#allocation4 + $0x180] sm:$0xff]
    %v429 = vld [vmem:[#allocation4 + $0x188] sm:$0xff]
    %v430 = vld [vmem:[#allocation4 + $0x190] sm:$0xff]
    %v431 = vld [vmem:[#allocation4 + $0x198] sm:$0xff]
    %v432 = vld [vmem:[#allocation4 + $0x1a0] sm:$0xff]
    %v433 = vld [vmem:[#allocation4 + $0x1a8] sm:$0xff]
    %v434 = vld [vmem:[#allocation4 + $0x1b0] sm:$0xff]
    %v435 = vld [vmem:[#allocation4 + $0x1b8] sm:$0xff]
    %v436 = vld [vmem:[#allocation4 + $0x1c0] sm:$0xff]
    %v437 = vld [vmem:[#allocation4 + $0x1c8] sm:$0xff]
    %v438 = vld [vmem:[#allocation4 + $0x1d0] sm:$0xff]
    %v439 = vld [vmem:[#allocation4 + $0x1d8] sm:$0xff]
    %v440 = vld [vmem:[#allocation4 + $0x1e0] sm:$0xff]
    %v441 = vld [vmem:[#allocation4 + $0x1e8] sm:$0xff]
    %v442 = vld [vmem:[#allocation4 + $0x1f0] sm:$0xff]
    %v443 = vld [vmem:[#allocation4 + $0x1f8] sm:$0xff]
    %v444 = vld [vmem:[#allocation4 + $0x200] sm:$0xff]
    %v445 = vld [vmem:[#allocation4 + $0x208] sm:$0xff]
    %v446 = vld [vmem:[#allocation4 + $0x210] sm:$0xff]
    %v447 = vld [vmem:[#allocation4 + $0x218] sm:$0xff]
    %v448 = vld [vmem:[#allocation4 + $0x220] sm:$0xff]
    %v449 = vld [vmem:[#allocation4 + $0x228] sm:$0xff]
    %v450 = vld [vmem:[#allocation4 + $0x230] sm:$0xff]
    %v451 = vld [vmem:[#allocation4 + $0x238] sm:$0xff]
    %v452 = vld [vmem:[#allocation4 + $0x240] sm:$0xff]
    %v453 = vld [vmem:[#allocation4 + $0x248] sm:$0xff]
    %v454 = vld [vmem:[#allocation4 + $0x250] sm:$0xff]
    %v455 = vld [vmem:[#allocation4 + $0x258] sm:$0xff]
    %v456 = vld [vmem:[#allocation4 + $0x260] sm:$0xff]
    %v457 = vld [vmem:[#allocation4 + $0x268] sm:$0xff]
    %v458 = vld [vmem:[#allocation4 + $0x270] sm:$0xff]
    %v459 = vld [vmem:[#allocation4 + $0x278] sm:$0xff]
    %v460 = vld [vmem:[#allocation4 + $0x280] sm:$0xff]
    %v461 = vld [vmem:[#allocation4 + $0x288] sm:$0xff]
    %v462 = vld [vmem:[#allocation4 + $0x290] sm:$0xff]
    %v463 = vld [vmem:[#allocation4 + $0x298] sm:$0xff]
    %v464 = vld [vmem:[#allocation4 + $0x2a0] sm:$0xff]
    %v465 = vld [vmem:[#allocation4 + $0x2a8] sm:$0xff]
    %v466 = vld [vmem:[#allocation4 + $0x2b0] sm:$0xff]
    %v467 = vld [vmem:[#allocation4 + $0x2b8] sm:$0xff]
    %v468 = vld [vmem:[#allocation4 + $0x2c0] sm:$0xff]
    %v469 = vld [vmem:[#allocation4 + $0x2c8] sm:$0xff]
    %v470 = vld [vmem:[#allocation4 + $0x2d0] sm:$0xff]
    %v471 = vld [vmem:[#allocation4 + $0x2d8] sm:$0xff]
    %v472 = vld [vmem:[#allocation4 + $0x2e0] sm:$0xff]
    %v473 = vld [vmem:[#allocation4 + $0x2e8] sm:$0xff]
    %v474 = vld [vmem:[#allocation4 + $0x2f0] sm:$0xff]
    %v475 = vld [vmem:[#allocation4 + $0x2f8] sm:$0xff]
    %v476 = vld [vmem:[#allocation4 + $0x300] sm:$0xff]
    %v477 = vld [vmem:[#allocation4 + $0x308] sm:$0xff]
    %v478 = vld [vmem:[#allocation4 + $0x310] sm:$0xff]
    %v479 = vld [vmem:[#allocation4 + $0x318] sm:$0xff]
    %v480 = vld [vmem:[#allocation4 + $0x320] sm:$0xff]
    %v481 = vld [vmem:[#allocation4 + $0x328] sm:$0xff]
    %v482 = vld [vmem:[#allocation4 + $0x330] sm:$0xff]
    %v483 = vld [vmem:[#allocation4 + $0x338] sm:$0xff]
    %v484 = vld [vmem:[#allocation4 + $0x340] sm:$0xff]
    %v485 = vld [vmem:[#allocation4 + $0x348] sm:$0xff]
    %v486 = vld [vmem:[#allocation4 + $0x350] sm:$0xff]
    %v487 = vld [vmem:[#allocation4 + $0x358] sm:$0xff]
    %v488 = vld [vmem:[#allocation4 + $0x360] sm:$0xff]
    %v489 = vld [vmem:[#allocation4 + $0x368] sm:$0xff]
    %v490 = vld [vmem:[#allocation4 + $0x370] sm:$0xff]
    %v491 = vld [vmem:[#allocation4 + $0x378] sm:$0xff]
    %v492 = vld [vmem:[#allocation4 + $0x380] sm:$0xff]
    %v493 = vld [vmem:[#allocation4 + $0x388] sm:$0xff]
    %v494 = vld [vmem:[#allocation4 + $0x390] sm:$0xff]
    %v495 = vld [vmem:[#allocation4 + $0x398] sm:$0xff]
    %v496 = vld [vmem:[#allocation4 + $0x3a0] sm:$0xff]
    %v497 = vld [vmem:[#allocation4 + $0x3a8] sm:$0xff]
    %v498 = vld [vmem:[#allocation4 + $0x3b0] sm:$0xff]
    %v499 = vld [vmem:[#allocation4 + $0x3b8] sm:$0xff]
    %v500 = vld [vmem:[#allocation4 + $0x3c0] sm:$0xff]
    %v501 = vld [vmem:[#allocation4 + $0x3c8] sm:$0xff]
    %v502 = vld [vmem:[#allocation4 + $0x3d0] sm:$0xff]
    %v503 = vld [vmem:[#allocation4 + $0x3d8] sm:$0xff]
    %v504 = vld [vmem:[#allocation4 + $0x3e0] sm:$0xff]
    %v505 = vld [vmem:[#allocation4 + $0x3e8] sm:$0xff]
    %v506 = vld [vmem:[#allocation4 + $0x3f0] sm:$0xff]
    %v507 = vld [vmem:[#allocation4 + $0x3f8] sm:$0xff]
    %v508 = vlaneseq
    %v509 = vshrl.u32 %v508, 7
    %v510 = vsub.s32 1, %v509
    %v511 = vrot.slane %v96, %v510
    %v512 = vlaneseq
    %v513 = vshrl.u32 %v512, 7
    %v514 = vsub.s32 1, %v513
    %v515 = vrot.slane %v97, %v514
    %v516 = vlaneseq
    %v517 = vshrl.u32 %v516, 7
    %v518 = vsub.s32 1, %v517
    %v519 = vrot.slane %v98, %v518
    %v520 = vlaneseq
    %v521 = vshrl.u32 %v520, 7
    %v522 = vsub.s32 1, %v521
    %v523 = vrot.slane %v99, %v522
    %v652 = vunpack.c.l.b16 %v380
    %v653 = vunpack.c.h.b16 %v380
    %v654 = vunpack.c.l.b16 %v381
    %v655 = vunpack.c.h.b16 %v381
    %v656 = vunpack.c.l.b16 %v382
    %v657 = vunpack.c.h.b16 %v382
    %v658 = vunpack.c.l.b16 %v383
    %v659 = vunpack.c.h.b16 %v383
    %v660 = vunpack.c.l.b16 %v384
    %v661 = vunpack.c.h.b16 %v384
    %v662 = vunpack.c.l.b16 %v385
    %v663 = vunpack.c.h.b16 %v385
    %v664 = vunpack.c.l.b16 %v386
    %v665 = vunpack.c.h.b16 %v386
    %v666 = vunpack.c.l.b16 %v387
    %v667 = vunpack.c.h.b16 %v387
    %v668 = vunpack.c.l.b16 %v388
    %v669 = vunpack.c.h.b16 %v388
    %v670 = vunpack.c.l.b16 %v389
    %v671 = vunpack.c.h.b16 %v389
    %v672 = vunpack.c.l.b16 %v390
    %v673 = vunpack.c.h.b16 %v390
    %v674 = vunpack.c.l.b16 %v391
    %v675 = vunpack.c.h.b16 %v391
    %v676 = vunpack.c.l.b16 %v392
    %v677 = vunpack.c.h.b16 %v392
    %v678 = vunpack.c.l.b16 %v393
    %v679 = vunpack.c.h.b16 %v393
    %v680 = vunpack.c.l.b16 %v394
    %v681 = vunpack.c.h.b16 %v394
    %v682 = vunpack.c.l.b16 %v395
    %v683 = vunpack.c.h.b16 %v395
    %v684 = vunpack.c.l.b16 %v396
    %v685 = vunpack.c.h.b16 %v396
    %v686 = vunpack.c.l.b16 %v397
    %v687 = vunpack.c.h.b16 %v397
    %v688 = vunpack.c.l.b16 %v398
    %v689 = vunpack.c.h.b16 %v398
    %v690 = vunpack.c.l.b16 %v399
    %v691 = vunpack.c.h.b16 %v399
    %v692 = vunpack.c.l.b16 %v400
    %v693 = vunpack.c.h.b16 %v400
    %v694 = vunpack.c.l.b16 %v401
    %v695 = vunpack.c.h.b16 %v401
    %v696 = vunpack.c.l.b16 %v402
    %v697 = vunpack.c.h.b16 %v402
    %v698 = vunpack.c.l.b16 %v403
    %v699 = vunpack.c.h.b16 %v403
    %v700 = vunpack.c.l.b16 %v404
    %v701 = vunpack.c.h.b16 %v404
    %v702 = vunpack.c.l.b16 %v405
    %v703 = vunpack.c.h.b16 %v405
    %v704 = vunpack.c.l.b16 %v406
    %v705 = vunpack.c.h.b16 %v406
    %v706 = vunpack.c.l.b16 %v407
    %v707 = vunpack.c.h.b16 %v407
    %v708 = vunpack.c.l.b16 %v408
    %v709 = vunpack.c.h.b16 %v408
    %v710 = vunpack.c.l.b16 %v409
    %v711 = vunpack.c.h.b16 %v409
    %v712 = vunpack.c.l.b16 %v410
    %v713 = vunpack.c.h.b16 %v410
    %v714 = vunpack.c.l.b16 %v411
    %v715 = vunpack.c.h.b16 %v411
    %v716 = vunpack.c.l.b16 %v412
    %v717 = vunpack.c.h.b16 %v412
    %v718 = vunpack.c.l.b16 %v413
    %v719 = vunpack.c.h.b16 %v413
    %v720 = vunpack.c.l.b16 %v414
    %v721 = vunpack.c.h.b16 %v414
    %v722 = vunpack.c.l.b16 %v415
    %v723 = vunpack.c.h.b16 %v415
    %v724 = vunpack.c.l.b16 %v416
    %v725 = vunpack.c.h.b16 %v416
    %v726 = vunpack.c.l.b16 %v417
    %v727 = vunpack.c.h.b16 %v417
    %v728 = vunpack.c.l.b16 %v418
    %v729 = vunpack.c.h.b16 %v418
    %v730 = vunpack.c.l.b16 %v419
    %v731 = vunpack.c.h.b16 %v419
    %v732 = vunpack.c.l.b16 %v420
    %v733 = vunpack.c.h.b16 %v420
    %v734 = vunpack.c.l.b16 %v421
    %v735 = vunpack.c.h.b16 %v421
    %v736 = vunpack.c.l.b16 %v422
    %v737 = vunpack.c.h.b16 %v422
    %v738 = vunpack.c.l.b16 %v423
    %v739 = vunpack.c.h.b16 %v423
    %v740 = vunpack.c.l.b16 %v424
    %v741 = vunpack.c.h.b16 %v424
    %v742 = vunpack.c.l.b16 %v425
    %v743 = vunpack.c.h.b16 %v425
    %v744 = vunpack.c.l.b16 %v426
    %v745 = vunpack.c.h.b16 %v426
    %v746 = vunpack.c.l.b16 %v427
    %v747 = vunpack.c.h.b16 %v427
    %v748 = vunpack.c.l.b16 %v428
    %v749 = vunpack.c.h.b16 %v428
    %v750 = vunpack.c.l.b16 %v429
    %v751 = vunpack.c.h.b16 %v429
    %v752 = vunpack.c.l.b16 %v430
    %v753 = vunpack.c.h.b16 %v430
    %v754 = vunpack.c.l.b16 %v431
    %v755 = vunpack.c.h.b16 %v431
    %v756 = vunpack.c.l.b16 %v432
    %v757 = vunpack.c.h.b16 %v432
    %v758 = vunpack.c.l.b16 %v433
    %v759 = vunpack.c.h.b16 %v433
    %v760 = vunpack.c.l.b16 %v434
    %v761 = vunpack.c.h.b16 %v434
    %v762 = vunpack.c.l.b16 %v435
    %v763 = vunpack.c.h.b16 %v435
    %v764 = vunpack.c.l.b16 %v436
    %v765 = vunpack.c.h.b16 %v436
    %v766 = vunpack.c.l.b16 %v437
    %v767 = vunpack.c.h.b16 %v437
    %v768 = vunpack.c.l.b16 %v438
    %v769 = vunpack.c.h.b16 %v438
    %v770 = vunpack.c.l.b16 %v439
    %v771 = vunpack.c.h.b16 %v439
    %v772 = vunpack.c.l.b16 %v440
    %v773 = vunpack.c.h.b16 %v440
    %v774 = vunpack.c.l.b16 %v441
    %v775 = vunpack.c.h.b16 %v441
    %v776 = vunpack.c.l.b16 %v442
    %v777 = vunpack.c.h.b16 %v442
    %v778 = vunpack.c.l.b16 %v443
    %v779 = vunpack.c.h.b16 %v443
    %v780 = vunpack.c.l.b16 %v444
    %v781 = vunpack.c.h.b16 %v444
    %v782 = vunpack.c.l.b16 %v445
    %v783 = vunpack.c.h.b16 %v445
    %v784 = vunpack.c.l.b16 %v446
    %v785 = vunpack.c.h.b16 %v446
    %v786 = vunpack.c.l.b16 %v447
    %v787 = vunpack.c.h.b16 %v447
    %v788 = vunpack.c.l.b16 %v448
    %v789 = vunpack.c.h.b16 %v448
    %v790 = vunpack.c.l.b16 %v449
    %v791 = vunpack.c.h.b16 %v449
    %v792 = vunpack.c.l.b16 %v450
    %v793 = vunpack.c.h.b16 %v450
    %v794 = vunpack.c.l.b16 %v451
    %v795 = vunpack.c.h.b16 %v451
    %v796 = vunpack.c.l.b16 %v452
    %v797 = vunpack.c.h.b16 %v452
    %v798 = vunpack.c.l.b16 %v453
    %v799 = vunpack.c.h.b16 %v453
    %v800 = vunpack.c.l.b16 %v454
    %v801 = vunpack.c.h.b16 %v454
    %v802 = vunpack.c.l.b16 %v455
    %v803 = vunpack.c.h.b16 %v455
    %v804 = vunpack.c.l.b16 %v456
    %v805 = vunpack.c.h.b16 %v456
    %v806 = vunpack.c.l.b16 %v457
    %v807 = vunpack.c.h.b16 %v457
    %v808 = vunpack.c.l.b16 %v458
    %v809 = vunpack.c.h.b16 %v458
    %v810 = vunpack.c.l.b16 %v459
    %v811 = vunpack.c.h.b16 %v459
    %v812 = vunpack.c.l.b16 %v460
    %v813 = vunpack.c.h.b16 %v460
    %v814 = vunpack.c.l.b16 %v461
    %v815 = vunpack.c.h.b16 %v461
    %v816 = vunpack.c.l.b16 %v462
    %v817 = vunpack.c.h.b16 %v462
    %v818 = vunpack.c.l.b16 %v463
    %v819 = vunpack.c.h.b16 %v463
    %v820 = vunpack.c.l.b16 %v464
    %v821 = vunpack.c.h.b16 %v464
    %v822 = vunpack.c.l.b16 %v465
    %v823 = vunpack.c.h.b16 %v465
    %v824 = vunpack.c.l.b16 %v466
    %v825 = vunpack.c.h.b16 %v466
    %v826 = vunpack.c.l.b16 %v467
    %v827 = vunpack.c.h.b16 %v467
    %v828 = vunpack.c.l.b16 %v468
    %v829 = vunpack.c.h.b16 %v468
    %v830 = vunpack.c.l.b16 %v469
    %v831 = vunpack.c.h.b16 %v469
    %v832 = vunpack.c.l.b16 %v470
    %v833 = vunpack.c.h.b16 %v470
    %v834 = vunpack.c.l.b16 %v471
    %v835 = vunpack.c.h.b16 %v471
    %v836 = vunpack.c.l.b16 %v472
    %v837 = vunpack.c.h.b16 %v472
    %v838 = vunpack.c.l.b16 %v473
    %v839 = vunpack.c.h.b16 %v473
    %v840 = vunpack.c.l.b16 %v474
    %v841 = vunpack.c.h.b16 %v474
    %v842 = vunpack.c.l.b16 %v475
    %v843 = vunpack.c.h.b16 %v475
    %v844 = vunpack.c.l.b16 %v476
    %v845 = vunpack.c.h.b16 %v476
    %v846 = vunpack.c.l.b16 %v477
    %v847 = vunpack.c.h.b16 %v477
    %v848 = vunpack.c.l.b16 %v478
    %v849 = vunpack.c.h.b16 %v478
    %v850 = vunpack.c.l.b16 %v479
    %v851 = vunpack.c.h.b16 %v479
    %v852 = vunpack.c.l.b16 %v480
    %v853 = vunpack.c.h.b16 %v480
    %v854 = vunpack.c.l.b16 %v481
    %v855 = vunpack.c.h.b16 %v481
    %v856 = vunpack.c.l.b16 %v482
    %v857 = vunpack.c.h.b16 %v482
    %v858 = vunpack.c.l.b16 %v483
    %v859 = vunpack.c.h.b16 %v483
    %v860 = vunpack.c.l.b16 %v484
    %v861 = vunpack.c.h.b16 %v484
    %v862 = vunpack.c.l.b16 %v485
    %v863 = vunpack.c.h.b16 %v485
    %v864 = vunpack.c.l.b16 %v486
    %v865 = vunpack.c.h.b16 %v486
    %v866 = vunpack.c.l.b16 %v487
    %v867 = vunpack.c.h.b16 %v487
    %v868 = vunpack.c.l.b16 %v488
    %v869 = vunpack.c.h.b16 %v488
    %v870 = vunpack.c.l.b16 %v489
    %v871 = vunpack.c.h.b16 %v489
    %v872 = vunpack.c.l.b16 %v490
    %v873 = vunpack.c.h.b16 %v490
    %v874 = vunpack.c.l.b16 %v491
    %v875 = vunpack.c.h.b16 %v491
    %v876 = vunpack.c.l.b16 %v492
    %v877 = vunpack.c.h.b16 %v492
    %v878 = vunpack.c.l.b16 %v493
    %v879 = vunpack.c.h.b16 %v493
    %v880 = vunpack.c.l.b16 %v494
    %v881 = vunpack.c.h.b16 %v494
    %v882 = vunpack.c.l.b16 %v495
    %v883 = vunpack.c.h.b16 %v495
    %v884 = vunpack.c.l.b16 %v496
    %v885 = vunpack.c.h.b16 %v496
    %v886 = vunpack.c.l.b16 %v497
    %v887 = vunpack.c.h.b16 %v497
    %v888 = vunpack.c.l.b16 %v498
    %v889 = vunpack.c.h.b16 %v498
    %v890 = vunpack.c.l.b16 %v499
    %v891 = vunpack.c.h.b16 %v499
    %v892 = vunpack.c.l.b16 %v500
    %v893 = vunpack.c.h.b16 %v500
    %v894 = vunpack.c.l.b16 %v501
    %v895 = vunpack.c.h.b16 %v501
    %v896 = vunpack.c.l.b16 %v502
    %v897 = vunpack.c.h.b16 %v502
    %v898 = vunpack.c.l.b16 %v503
    %v899 = vunpack.c.h.b16 %v503
    %v900 = vunpack.c.l.b16 %v504
    %v901 = vunpack.c.h.b16 %v504
    %v902 = vunpack.c.l.b16 %v505
    %v903 = vunpack.c.h.b16 %v505
    %v904 = vunpack.c.l.b16 %v506
    %v905 = vunpack.c.h.b16 %v506
    %v906 = vunpack.c.l.b16 %v507
    %v907 = vunpack.c.h.b16 %v507
    %v908 = vpack.c.b16 %v656, %v652
    %v909 = vpack.c.b16 %v657, %v653
    %v910 = vpack.c.b16 %v658, %v654
    %v911 = vpack.c.b16 %v659, %v655
    %v912 = vpack.c.b16 %v664, %v660
    %v913 = vpack.c.b16 %v665, %v661
    %v914 = vpack.c.b16 %v666, %v662
    %v915 = vpack.c.b16 %v667, %v663
    %v916 = vpack.c.b16 %v672, %v668
    %v917 = vpack.c.b16 %v673, %v669
    %v918 = vpack.c.b16 %v674, %v670
    %v919 = vpack.c.b16 %v675, %v671
    %v920 = vpack.c.b16 %v680, %v676
    %v921 = vpack.c.b16 %v681, %v677
    %v922 = vpack.c.b16 %v682, %v678
    %v923 = vpack.c.b16 %v683, %v679
    %v924 = vpack.c.b16 %v688, %v684
    %v925 = vpack.c.b16 %v689, %v685
    %v926 = vpack.c.b16 %v690, %v686
    %v927 = vpack.c.b16 %v691, %v687
    %v928 = vpack.c.b16 %v696, %v692
    %v929 = vpack.c.b16 %v697, %v693
    %v930 = vpack.c.b16 %v698, %v694
    %v931 = vpack.c.b16 %v699, %v695
    %v932 = vpack.c.b16 %v704, %v700
    %v933 = vpack.c.b16 %v705, %v701
    %v934 = vpack.c.b16 %v706, %v702
    %v935 = vpack.c.b16 %v707, %v703
    %v936 = vpack.c.b16 %v712, %v708
    %v937 = vpack.c.b16 %v713, %v709
    %v938 = vpack.c.b16 %v714, %v710
    %v939 = vpack.c.b16 %v715, %v711
    %v940 = vpack.c.b16 %v720, %v716
    %v941 = vpack.c.b16 %v721, %v717
    %v942 = vpack.c.b16 %v722, %v718
    %v943 = vpack.c.b16 %v723, %v719
    %v944 = vpack.c.b16 %v728, %v724
    %v945 = vpack.c.b16 %v729, %v725
    %v946 = vpack.c.b16 %v730, %v726
    %v947 = vpack.c.b16 %v731, %v727
    %v948 = vpack.c.b16 %v736, %v732
    %v949 = vpack.c.b16 %v737, %v733
    %v950 = vpack.c.b16 %v738, %v734
    %v951 = vpack.c.b16 %v739, %v735
    %v952 = vpack.c.b16 %v744, %v740
    %v953 = vpack.c.b16 %v745, %v741
    %v954 = vpack.c.b16 %v746, %v742
    %v955 = vpack.c.b16 %v747, %v743
    %v956 = vpack.c.b16 %v752, %v748
    %v957 = vpack.c.b16 %v753, %v749
    %v958 = vpack.c.b16 %v754, %v750
    %v959 = vpack.c.b16 %v755, %v751
    %v960 = vpack.c.b16 %v760, %v756
    %v961 = vpack.c.b16 %v761, %v757
    %v962 = vpack.c.b16 %v762, %v758
    %v963 = vpack.c.b16 %v763, %v759
    %v964 = vpack.c.b16 %v768, %v764
    %v965 = vpack.c.b16 %v769, %v765
    %v966 = vpack.c.b16 %v770, %v766
    %v967 = vpack.c.b16 %v771, %v767
    %v968 = vpack.c.b16 %v776, %v772
    %v969 = vpack.c.b16 %v777, %v773
    %v970 = vpack.c.b16 %v778, %v774
    %v971 = vpack.c.b16 %v779, %v775
    %v972 = vpack.c.b16 %v784, %v780
    %v973 = vpack.c.b16 %v785, %v781
    %v974 = vpack.c.b16 %v786, %v782
    %v975 = vpack.c.b16 %v787, %v783
    %v976 = vpack.c.b16 %v792, %v788
    %v977 = vpack.c.b16 %v793, %v789
    %v978 = vpack.c.b16 %v794, %v790
    %v979 = vpack.c.b16 %v795, %v791
    %v980 = vpack.c.b16 %v800, %v796
    %v981 = vpack.c.b16 %v801, %v797
    %v982 = vpack.c.b16 %v802, %v798
    %v983 = vpack.c.b16 %v803, %v799
    %v984 = vpack.c.b16 %v808, %v804
    %v985 = vpack.c.b16 %v809, %v805
    %v986 = vpack.c.b16 %v810, %v806
    %v987 = vpack.c.b16 %v811, %v807
    %v988 = vpack.c.b16 %v816, %v812
    %v989 = vpack.c.b16 %v817, %v813
    %v990 = vpack.c.b16 %v818, %v814
    %v991 = vpack.c.b16 %v819, %v815
    %v992 = vpack.c.b16 %v824, %v820
    %v993 = vpack.c.b16 %v825, %v821
    %v994 = vpack.c.b16 %v826, %v822
    %v995 = vpack.c.b16 %v827, %v823
    %v996 = vpack.c.b16 %v832, %v828
    %v997 = vpack.c.b16 %v833, %v829
    %v998 = vpack.c.b16 %v834, %v830
    %v999 = vpack.c.b16 %v835, %v831
    %v1000 = vpack.c.b16 %v840, %v836
    %v1001 = vpack.c.b16 %v841, %v837
    %v1002 = vpack.c.b16 %v842, %v838
    %v1003 = vpack.c.b16 %v843, %v839
    %v1004 = vpack.c.b16 %v848, %v844
    %v1005 = vpack.c.b16 %v849, %v845
    %v1006 = vpack.c.b16 %v850, %v846
    %v1007 = vpack.c.b16 %v851, %v847
    %v1008 = vpack.c.b16 %v856, %v852
    %v1009 = vpack.c.b16 %v857, %v853
    %v1010 = vpack.c.b16 %v858, %v854
    %v1011 = vpack.c.b16 %v859, %v855
    %v1012 = vpack.c.b16 %v864, %v860
    %v1013 = vpack.c.b16 %v865, %v861
    %v1014 = vpack.c.b16 %v866, %v862
    %v1015 = vpack.c.b16 %v867, %v863
    %v1016 = vpack.c.b16 %v872, %v868
    %v1017 = vpack.c.b16 %v873, %v869
    %v1018 = vpack.c.b16 %v874, %v870
    %v1019 = vpack.c.b16 %v875, %v871
    %v1020 = vpack.c.b16 %v880, %v876
    %v1021 = vpack.c.b16 %v881, %v877
    %v1022 = vpack.c.b16 %v882, %v878
    %v1023 = vpack.c.b16 %v883, %v879
    %v1024 = vpack.c.b16 %v888, %v884
    %v1025 = vpack.c.b16 %v889, %v885
    %v1026 = vpack.c.b16 %v890, %v886
    %v1027 = vpack.c.b16 %v891, %v887
    %v1028 = vpack.c.b16 %v896, %v892
    %v1029 = vpack.c.b16 %v897, %v893
    %v1030 = vpack.c.b16 %v898, %v894
    %v1031 = vpack.c.b16 %v899, %v895
    %v1032 = vpack.c.b16 %v904, %v900
    %v1033 = vpack.c.b16 %v905, %v901
    %v1034 = vpack.c.b16 %v906, %v902
    %v1035 = vpack.c.b16 %v907, %v903
    %1164 = vmatprep.subr.bf16.mxu0 %v909
    %1165 = vmatpush1.bf16.msra.mxu0 %v908
    %1166 = vmatprep.subr.bf16.mxu0 %v913
    %1167 = vmatpush1.bf16.msra.mxu0 %v912
    %1168 = vmatprep.subr.bf16.mxu0 %v917
    %1169 = vmatpush1.bf16.msra.mxu0 %v916
    %1170 = vmatprep.subr.bf16.mxu0 %v921
    %1171 = vmatpush1.bf16.msra.mxu0 %v920
    %1172 = vmatprep.subr.bf16.mxu0 %v925
    %1173 = vmatpush1.bf16.msra.mxu0 %v924
    %1174 = vmatprep.subr.bf16.mxu0 %v929
    %1175 = vmatpush1.bf16.msra.mxu0 %v928
    %1176 = vmatprep.subr.bf16.mxu0 %v933
    %1177 = vmatpush1.bf16.msra.mxu0 %v932
    %1178 = vmatprep.subr.bf16.mxu0 %v937
    %1179 = vmatpush1.bf16.msra.mxu0 %v936
    %1180 = vmatprep.subr.bf16.mxu0 %v941
    %1181 = vmatpush1.bf16.msra.mxu0 %v940
    %1182 = vmatprep.subr.bf16.mxu0 %v945
    %1183 = vmatpush1.bf16.msra.mxu0 %v944
    %1184 = vmatprep.subr.bf16.mxu0 %v949
    %1185 = vmatpush1.bf16.msra.mxu0 %v948
    %1186 = vmatprep.subr.bf16.mxu0 %v953
    %1187 = vmatpush1.bf16.msra.mxu0 %v952
    %1188 = vmatprep.subr.bf16.mxu0 %v957
    %1189 = vmatpush1.bf16.msra.mxu0 %v956
    %1190 = vmatprep.subr.bf16.mxu0 %v961
    %1191 = vmatpush1.bf16.msra.mxu0 %v960
    %1192 = vmatprep.subr.bf16.mxu0 %v965
    %1193 = vmatpush1.bf16.msra.mxu0 %v964
    %1194 = vmatprep.subr.bf16.mxu0 %v969
    %1195 = vmatpush1.bf16.msra.mxu0 %v968
    %1196 = vmatprep.mubr.bf16.mxu0 %v377
    %1197 = vmatmul.mubr.bf16.gmra.mrb[0].mxu0 %v376
    %v1198 = vpop.f32.mrb[0].mxu0
    %v1199 = vadd.f32 %v511, %v1198
    %v1200 = vpop.f32.mrb[0].mxu0
    %v1201 = vadd.f32 %v515, %v1200
    %v1202 = vpop.f32.mrb[0].mxu0
    %v1203 = vpop.f32.mrb[0].mxu0
    %1204 = vdwg.mxu0
    %1205 = vmatprep.subr.bf16.mxu0 %v973
    %1206 = vmatpush1.bf16.msra.mxu0 %v972
    %1207 = vmatprep.subr.bf16.mxu0 %v977
    %1208 = vmatpush1.bf16.msra.mxu0 %v976
    %1209 = vmatprep.subr.bf16.mxu0 %v981
    %1210 = vmatpush1.bf16.msra.mxu0 %v980
    %1211 = vmatprep.subr.bf16.mxu0 %v985
    %1212 = vmatpush1.bf16.msra.mxu0 %v984
    %1213 = vmatprep.subr.bf16.mxu0 %v989
    %1214 = vmatpush1.bf16.msra.mxu0 %v988
    %1215 = vmatprep.subr.bf16.mxu0 %v993
    %1216 = vmatpush1.bf16.msra.mxu0 %v992
    %1217 = vmatprep.subr.bf16.mxu0 %v997
    %1218 = vmatpush1.bf16.msra.mxu0 %v996
    %1219 = vmatprep.subr.bf16.mxu0 %v1001
    %1220 = vmatpush1.bf16.msra.mxu0 %v1000
    %1221 = vmatprep.subr.bf16.mxu0 %v1005
    %1222 = vmatpush1.bf16.msra.mxu0 %v1004
    %1223 = vmatprep.subr.bf16.mxu0 %v1009
    %1224 = vmatpush1.bf16.msra.mxu0 %v1008
    %1225 = vmatprep.subr.bf16.mxu0 %v1013
    %1226 = vmatpush1.bf16.msra.mxu0 %v1012
    %1227 = vmatprep.subr.bf16.mxu0 %v1017
    %1228 = vmatpush1.bf16.msra.mxu0 %v1016
    %1229 = vmatprep.subr.bf16.mxu0 %v1021
    %1230 = vmatpush1.bf16.msra.mxu0 %v1020
    %1231 = vmatprep.subr.bf16.mxu0 %v1025
    %1232 = vmatpush1.bf16.msra.mxu0 %v1024
    %1233 = vmatprep.subr.bf16.mxu0 %v1029
    %1234 = vmatpush1.bf16.msra.mxu0 %v1028
    %1235 = vmatprep.subr.bf16.mxu0 %v1033
    %1236 = vmatpush1.bf16.msra.mxu0 %v1032
    %1237 = vmatprep.mubr.bf16.mxu0 %v379
    %1238 = vmatmul.mubr.bf16.gmra.mrb[0].mxu0 %v378
    %v1239 = vpop.f32.mrb[0].mxu0
    %v1240 = vadd.f32 %v1199, %v1239
    %v1241 = vpop.f32.mrb[0].mxu0
    %v1242 = vadd.f32 %v1201, %v1241
    %v1243 = vpop.f32.mrb[0].mxu0
    %v1244 = vpop.f32.mrb[0].mxu0
    %1245 = vdwg.mxu0
    %1246 = vmatprep.subr.bf16.mxu0 %v911
    %1247 = vmatpush1.bf16.msra.mxu0 %v910
    %1248 = vmatprep.subr.bf16.mxu0 %v915
    %1249 = vmatpush1.bf16.msra.mxu0 %v914
    %1250 = vmatprep.subr.bf16.mxu0 %v919
    %1251 = vmatpush1.bf16.msra.mxu0 %v918
    %1252 = vmatprep.subr.bf16.mxu0 %v923
    %1253 = vmatpush1.bf16.msra.mxu0 %v922
    %1254 = vmatprep.subr.bf16.mxu0 %v927
    %1255 = vmatpush1.bf16.msra.mxu0 %v926
    %1256 = vmatprep.subr.bf16.mxu0 %v931
    %1257 = vmatpush1.bf16.msra.mxu0 %v930
    %1258 = vmatprep.subr.bf16.mxu0 %v935
    %1259 = vmatpush1.bf16.msra.mxu0 %v934
    %1260 = vmatprep.subr.bf16.mxu0 %v939
    %1261 = vmatpush1.bf16.msra.mxu0 %v938
    %1262 = vmatprep.subr.bf16.mxu0 %v943
    %1263 = vmatpush1.bf16.msra.mxu0 %v942
    %1264 = vmatprep.subr.bf16.mxu0 %v947
    %1265 = vmatpush1.bf16.msra.mxu0 %v946
    %1266 = vmatprep.subr.bf16.mxu0 %v951
    %1267 = vmatpush1.bf16.msra.mxu0 %v950
    %1268 = vmatprep.subr.bf16.mxu0 %v955
    %1269 = vmatpush1.bf16.msra.mxu0 %v954
    %1270 = vmatprep.subr.bf16.mxu0 %v959
    %1271 = vmatpush1.bf16.msra.mxu0 %v958
    %1272 = vmatprep.subr.bf16.mxu0 %v963
    %1273 = vmatpush1.bf16.msra.mxu0 %v962
    %1274 = vmatprep.subr.bf16.mxu0 %v967
    %1275 = vmatpush1.bf16.msra.mxu0 %v966
    %1276 = vmatprep.subr.bf16.mxu0 %v971
    %1277 = vmatpush1.bf16.msra.mxu0 %v970
    %1278 = vmatprep.mubr.bf16.mxu0 %v377
    %1279 = vmatmul.mubr.bf16.gmra.mrb[0].mxu0 %v376
    %v1280 = vpop.f32.mrb[0].mxu0
    %v1281 = vadd.f32 %v519, %v1280
    %v1282 = vpop.f32.mrb[0].mxu0
    %v1283 = vadd.f32 %v523, %v1282
    %v1284 = vpop.f32.mrb[0].mxu0
    %v1285 = vpop.f32.mrb[0].mxu0
    %1286 = vdwg.mxu0
    %1287 = vmatprep.subr.bf16.mxu0 %v975
    %1288 = vmatpush1.bf16.msra.mxu0 %v974
    %1289 = vmatprep.subr.bf16.mxu0 %v979
    %1290 = vmatpush1.bf16.msra.mxu0 %v978
    %1291 = vmatprep.subr.bf16.mxu0 %v983
    %1292 = vmatpush1.bf16.msra.mxu0 %v982
    %1293 = vmatprep.subr.bf16.mxu0 %v987
    %1294 = vmatpush1.bf16.msra.mxu0 %v986
    %1295 = vmatprep.subr.bf16.mxu0 %v991
    %1296 = vmatpush1.bf16.msra.mxu0 %v990
    %1297 = vmatprep.subr.bf16.mxu0 %v995
    %1298 = vmatpush1.bf16.msra.mxu0 %v994
    %1299 = vmatprep.subr.bf16.mxu0 %v999
    %1300 = vmatpush1.bf16.msra.mxu0 %v998
    %1301 = vmatprep.subr.bf16.mxu0 %v1003
    %1302 = vmatpush1.bf16.msra.mxu0 %v1002
    %1303 = vmatprep.subr.bf16.mxu0 %v1007
    %1304 = vmatpush1.bf16.msra.mxu0 %v1006
    %1305 = vmatprep.subr.bf16.mxu0 %v1011
    %1306 = vmatpush1.bf16.msra.mxu0 %v1010
    %1307 = vmatprep.subr.bf16.mxu0 %v1015
    %1308 = vmatpush1.bf16.msra.mxu0 %v1014
    %1309 = vmatprep.subr.bf16.mxu0 %v1019
    %1310 = vmatpush1.bf16.msra.mxu0 %v1018
    %1311 = vmatprep.subr.bf16.mxu0 %v1023
    %1312 = vmatpush1.bf16.msra.mxu0 %v1022
    %1313 = vmatprep.subr.bf16.mxu0 %v1027
    %1314 = vmatpush1.bf16.msra.mxu0 %v1026
    %1315 = vmatprep.subr.bf16.mxu0 %v1031
    %1316 = vmatpush1.bf16.msra.mxu0 %v1030
    %1317 = vmatprep.subr.bf16.mxu0 %v1035
    %1318 = vmatpush1.bf16.msra.mxu0 %v1034
    %1319 = vmatprep.mubr.bf16.mxu0 %v379
    %1320 = vmatmul.mubr.bf16.gmra.mrb[0].mxu0 %v378
    %v1321 = vpop.f32.mrb[0].mxu0
    %v1322 = vadd.f32 %v1281, %v1321
    %v1323 = vpop.f32.mrb[0].mxu0
    %v1324 = vadd.f32 %v1283, %v1323
    %v1325 = vpop.f32.mrb[0].mxu0
    %v1326 = vpop.f32.mrb[0].mxu0
    %1327 = vdwg.mxu0
    %v1328 = vmax.f32 %v1240, 0.0
    %v1329 = vmax.f32 %v1242, 0.0
    %v1330 = vmax.f32 %v1322, 0.0
    %v1331 = vmax.f32 %v1324, 0.0
    %v1332 = vpack.c.bf16 %v1328, %v1328
    %v1333 = vpack.c.bf16 %v1329, %v1329
    %v1334 = vpack.c.bf16 %v1330, %v1330
    %v1335 = vpack.c.bf16 %v1331, %v1331
    %v1336 = vld [vmem:[#allocation6] sm:$0xff]
    %v1337 = vld [vmem:[#allocation6 + $0x8] sm:$0xff]
    %v1338 = vld [vmem:[#allocation6 + $0x10] sm:$0xff]
    %v1339 = vld [vmem:[#allocation6 + $0x18] sm:$0xff]
    %v1340 = vld [vmem:[#allocation6 + $0x20] sm:$0xff]
    %v1341 = vld [vmem:[#allocation6 + $0x28] sm:$0xff]
    %v1342 = vld [vmem:[#allocation6 + $0x30] sm:$0xff]
    %v1343 = vld [vmem:[#allocation6 + $0x38] sm:$0xff]
    %v1344 = vld [vmem:[#allocation6 + $0x40] sm:$0xff]
    %v1345 = vld [vmem:[#allocation6 + $0x48] sm:$0xff]
    %v1346 = vld [vmem:[#allocation6 + $0x50] sm:$0xff]
    %v1347 = vld [vmem:[#allocation6 + $0x58] sm:$0xff]
    %v1348 = vld [vmem:[#allocation6 + $0x60] sm:$0xff]
    %v1349 = vld [vmem:[#allocation6 + $0x68] sm:$0xff]
    %v1350 = vld [vmem:[#allocation6 + $0x70] sm:$0xff]
    %v1351 = vld [vmem:[#allocation6 + $0x78] sm:$0xff]
    %v1352 = vld [vmem:[#allocation6 + $0x80] sm:$0xff]
    %v1353 = vld [vmem:[#allocation6 + $0x88] sm:$0xff]
    %v1354 = vld [vmem:[#allocation6 + $0x90] sm:$0xff]
    %v1355 = vld [vmem:[#allocation6 + $0x98] sm:$0xff]
    %v1356 = vld [vmem:[#allocation6 + $0xa0] sm:$0xff]
    %v1357 = vld [vmem:[#allocation6 + $0xa8] sm:$0xff]
    %v1358 = vld [vmem:[#allocation6 + $0xb0] sm:$0xff]
    %v1359 = vld [vmem:[#allocation6 + $0xb8] sm:$0xff]
    %v1360 = vld [vmem:[#allocation6 + $0xc0] sm:$0xff]
    %v1361 = vld [vmem:[#allocation6 + $0xc8] sm:$0xff]
    %v1362 = vld [vmem:[#allocation6 + $0xd0] sm:$0xff]
    %v1363 = vld [vmem:[#allocation6 + $0xd8] sm:$0xff]
    %v1364 = vld [vmem:[#allocation6 + $0xe0] sm:$0xff]
    %v1365 = vld [vmem:[#allocation6 + $0xe8] sm:$0xff]
    %v1366 = vld [vmem:[#allocation6 + $0xf0] sm:$0xff]
    %v1367 = vld [vmem:[#allocation6 + $0xf8] sm:$0xff]
    %v1368 = vld [vmem:[#allocation6 + $0x100] sm:$0xff]
    %v1369 = vld [vmem:[#allocation6 + $0x108] sm:$0xff]
    %v1370 = vld [vmem:[#allocation6 + $0x110] sm:$0xff]
    %v1371 = vld [vmem:[#allocation6 + $0x118] sm:$0xff]
    %v1372 = vld [vmem:[#allocation6 + $0x120] sm:$0xff]
    %v1373 = vld [vmem:[#allocation6 + $0x128] sm:$0xff]
    %v1374 = vld [vmem:[#allocation6 + $0x130] sm:$0xff]
    %v1375 = vld [vmem:[#allocation6 + $0x138] sm:$0xff]
    %v1376 = vld [vmem:[#allocation6 + $0x140] sm:$0xff]
    %v1377 = vld [vmem:[#allocation6 + $0x148] sm:$0xff]
    %v1378 = vld [vmem:[#allocation6 + $0x150] sm:$0xff]
    %v1379 = vld [vmem:[#allocation6 + $0x158] sm:$0xff]
    %v1380 = vld [vmem:[#allocation6 + $0x160] sm:$0xff]
    %v1381 = vld [vmem:[#allocation6 + $0x168] sm:$0xff]
    %v1382 = vld [vmem:[#allocation6 + $0x170] sm:$0xff]
    %v1383 = vld [vmem:[#allocation6 + $0x178] sm:$0xff]
    %v1384 = vld [vmem:[#allocation6 + $0x180] sm:$0xff]
    %v1385 = vld [vmem:[#allocation6 + $0x188] sm:$0xff]
    %v1386 = vld [vmem:[#allocation6 + $0x190] sm:$0xff]
    %v1387 = vld [vmem:[#allocation6 + $0x198] sm:$0xff]
    %v1388 = vld [vmem:[#allocation6 + $0x1a0] sm:$0xff]
    %v1389 = vld [vmem:[#allocation6 + $0x1a8] sm:$0xff]
    %v1390 = vld [vmem:[#allocation6 + $0x1b0] sm:$0xff]
    %v1391 = vld [vmem:[#allocation6 + $0x1b8] sm:$0xff]
    %v1392 = vld [vmem:[#allocation6 + $0x1c0] sm:$0xff]
    %v1393 = vld [vmem:[#allocation6 + $0x1c8] sm:$0xff]
    %v1394 = vld [vmem:[#allocation6 + $0x1d0] sm:$0xff]
    %v1395 = vld [vmem:[#allocation6 + $0x1d8] sm:$0xff]
    %v1396 = vld [vmem:[#allocation6 + $0x1e0] sm:$0xff]
    %v1397 = vld [vmem:[#allocation6 + $0x1e8] sm:$0xff]
    %v1398 = vld [vmem:[#allocation6 + $0x1f0] sm:$0xff]
    %v1399 = vld [vmem:[#allocation6 + $0x1f8] sm:$0xff]
    %v1400 = vlaneseq
    %v1401 = vshrl.u32 %v1400, 7
    %v1402 = vsub.s32 2, %v1401
    %v1403 = vrot.slane %v96, %v1402
    %v1404 = vlaneseq
    %v1405 = vshrl.u32 %v1404, 7
    %v1406 = vsub.s32 2, %v1405
    %v1407 = vrot.slane %v97, %v1406
    %v1472 = vunpack.c.l.b16 %v1336
    %v1473 = vunpack.c.h.b16 %v1336
    %v1474 = vunpack.c.l.b16 %v1337
    %v1475 = vunpack.c.h.b16 %v1337
    %v1476 = vunpack.c.l.b16 %v1338
    %v1477 = vunpack.c.h.b16 %v1338
    %v1478 = vunpack.c.l.b16 %v1339
    %v1479 = vunpack.c.h.b16 %v1339
    %v1480 = vunpack.c.l.b16 %v1340
    %v1481 = vunpack.c.h.b16 %v1340
    %v1482 = vunpack.c.l.b16 %v1341
    %v1483 = vunpack.c.h.b16 %v1341
    %v1484 = vunpack.c.l.b16 %v1342
    %v1485 = vunpack.c.h.b16 %v1342
    %v1486 = vunpack.c.l.b16 %v1343
    %v1487 = vunpack.c.h.b16 %v1343
    %v1488 = vunpack.c.l.b16 %v1344
    %v1489 = vunpack.c.h.b16 %v1344
    %v1490 = vunpack.c.l.b16 %v1345
    %v1491 = vunpack.c.h.b16 %v1345
    %v1492 = vunpack.c.l.b16 %v1346
    %v1493 = vunpack.c.h.b16 %v1346
    %v1494 = vunpack.c.l.b16 %v1347
    %v1495 = vunpack.c.h.b16 %v1347
    %v1496 = vunpack.c.l.b16 %v1348
    %v1497 = vunpack.c.h.b16 %v1348
    %v1498 = vunpack.c.l.b16 %v1349
    %v1499 = vunpack.c.h.b16 %v1349
    %v1500 = vunpack.c.l.b16 %v1350
    %v1501 = vunpack.c.h.b16 %v1350
    %v1502 = vunpack.c.l.b16 %v1351
    %v1503 = vunpack.c.h.b16 %v1351
    %v1504 = vunpack.c.l.b16 %v1352
    %v1505 = vunpack.c.h.b16 %v1352
    %v1506 = vunpack.c.l.b16 %v1353
    %v1507 = vunpack.c.h.b16 %v1353
    %v1508 = vunpack.c.l.b16 %v1354
    %v1509 = vunpack.c.h.b16 %v1354
    %v1510 = vunpack.c.l.b16 %v1355
    %v1511 = vunpack.c.h.b16 %v1355
    %v1512 = vunpack.c.l.b16 %v1356
    %v1513 = vunpack.c.h.b16 %v1356
    %v1514 = vunpack.c.l.b16 %v1357
    %v1515 = vunpack.c.h.b16 %v1357
    %v1516 = vunpack.c.l.b16 %v1358
    %v1517 = vunpack.c.h.b16 %v1358
    %v1518 = vunpack.c.l.b16 %v1359
    %v1519 = vunpack.c.h.b16 %v1359
    %v1520 = vunpack.c.l.b16 %v1360
    %v1521 = vunpack.c.h.b16 %v1360
    %v1522 = vunpack.c.l.b16 %v1361
    %v1523 = vunpack.c.h.b16 %v1361
    %v1524 = vunpack.c.l.b16 %v1362
    %v1525 = vunpack.c.h.b16 %v1362
    %v1526 = vunpack.c.l.b16 %v1363
    %v1527 = vunpack.c.h.b16 %v1363
    %v1528 = vunpack.c.l.b16 %v1364
    %v1529 = vunpack.c.h.b16 %v1364
    %v1530 = vunpack.c.l.b16 %v1365
    %v1531 = vunpack.c.h.b16 %v1365
    %v1532 = vunpack.c.l.b16 %v1366
    %v1533 = vunpack.c.h.b16 %v1366
    %v1534 = vunpack.c.l.b16 %v1367
    %v1535 = vunpack.c.h.b16 %v1367
    %v1536 = vunpack.c.l.b16 %v1368
    %v1537 = vunpack.c.h.b16 %v1368
    %v1538 = vunpack.c.l.b16 %v1369
    %v1539 = vunpack.c.h.b16 %v1369
    %v1540 = vunpack.c.l.b16 %v1370
    %v1541 = vunpack.c.h.b16 %v1370
    %v1542 = vunpack.c.l.b16 %v1371
    %v1543 = vunpack.c.h.b16 %v1371
    %v1544 = vunpack.c.l.b16 %v1372
    %v1545 = vunpack.c.h.b16 %v1372
    %v1546 = vunpack.c.l.b16 %v1373
    %v1547 = vunpack.c.h.b16 %v1373
    %v1548 = vunpack.c.l.b16 %v1374
    %v1549 = vunpack.c.h.b16 %v1374
    %v1550 = vunpack.c.l.b16 %v1375
    %v1551 = vunpack.c.h.b16 %v1375
    %v1552 = vunpack.c.l.b16 %v1376
    %v1553 = vunpack.c.h.b16 %v1376
    %v1554 = vunpack.c.l.b16 %v1377
    %v1555 = vunpack.c.h.b16 %v1377
    %v1556 = vunpack.c.l.b16 %v1378
    %v1557 = vunpack.c.h.b16 %v1378
    %v1558 = vunpack.c.l.b16 %v1379
    %v1559 = vunpack.c.h.b16 %v1379
    %v1560 = vunpack.c.l.b16 %v1380
    %v1561 = vunpack.c.h.b16 %v1380
    %v1562 = vunpack.c.l.b16 %v1381
    %v1563 = vunpack.c.h.b16 %v1381
    %v1564 = vunpack.c.l.b16 %v1382
    %v1565 = vunpack.c.h.b16 %v1382
    %v1566 = vunpack.c.l.b16 %v1383
    %v1567 = vunpack.c.h.b16 %v1383
    %v1568 = vunpack.c.l.b16 %v1384
    %v1569 = vunpack.c.h.b16 %v1384
    %v1570 = vunpack.c.l.b16 %v1385
    %v1571 = vunpack.c.h.b16 %v1385
    %v1572 = vunpack.c.l.b16 %v1386
    %v1573 = vunpack.c.h.b16 %v1386
    %v1574 = vunpack.c.l.b16 %v1387
    %v1575 = vunpack.c.h.b16 %v1387
    %v1576 = vunpack.c.l.b16 %v1388
    %v1577 = vunpack.c.h.b16 %v1388
    %v1578 = vunpack.c.l.b16 %v1389
    %v1579 = vunpack.c.h.b16 %v1389
    %v1580 = vunpack.c.l.b16 %v1390
    %v1581 = vunpack.c.h.b16 %v1390
    %v1582 = vunpack.c.l.b16 %v1391
    %v1583 = vunpack.c.h.b16 %v1391
    %v1584 = vunpack.c.l.b16 %v1392
    %v1585 = vunpack.c.h.b16 %v1392
    %v1586 = vunpack.c.l.b16 %v1393
    %v1587 = vunpack.c.h.b16 %v1393
    %v1588 = vunpack.c.l.b16 %v1394
    %v1589 = vunpack.c.h.b16 %v1394
    %v1590 = vunpack.c.l.b16 %v1395
    %v1591 = vunpack.c.h.b16 %v1395
    %v1592 = vunpack.c.l.b16 %v1396
    %v1593 = vunpack.c.h.b16 %v1396
    %v1594 = vunpack.c.l.b16 %v1397
    %v1595 = vunpack.c.h.b16 %v1397
    %v1596 = vunpack.c.l.b16 %v1398
    %v1597 = vunpack.c.h.b16 %v1398
    %v1598 = vunpack.c.l.b16 %v1399
    %v1599 = vunpack.c.h.b16 %v1399
    %v1600 = vpack.c.b16 %v1474, %v1472
    %v1601 = vpack.c.b16 %v1475, %v1473
    %v1602 = vpack.c.b16 %v1478, %v1476
    %v1603 = vpack.c.b16 %v1479, %v1477
    %v1604 = vpack.c.b16 %v1482, %v1480
    %v1605 = vpack.c.b16 %v1483, %v1481
    %v1606 = vpack.c.b16 %v1486, %v1484
    %v1607 = vpack.c.b16 %v1487, %v1485
    %v1608 = vpack.c.b16 %v1490, %v1488
    %v1609 = vpack.c.b16 %v1491, %v1489
    %v1610 = vpack.c.b16 %v1494, %v1492
    %v1611 = vpack.c.b16 %v1495, %v1493
    %v1612 = vpack.c.b16 %v1498, %v1496
    %v1613 = vpack.c.b16 %v1499, %v1497
    %v1614 = vpack.c.b16 %v1502, %v1500
    %v1615 = vpack.c.b16 %v1503, %v1501
    %v1616 = vpack.c.b16 %v1506, %v1504
    %v1617 = vpack.c.b16 %v1507, %v1505
    %v1618 = vpack.c.b16 %v1510, %v1508
    %v1619 = vpack.c.b16 %v1511, %v1509
    %v1620 = vpack.c.b16 %v1514, %v1512
    %v1621 = vpack.c.b16 %v1515, %v1513
    %v1622 = vpack.c.b16 %v1518, %v1516
    %v1623 = vpack.c.b16 %v1519, %v1517
    %v1624 = vpack.c.b16 %v1522, %v1520
    %v1625 = vpack.c.b16 %v1523, %v1521
    %v1626 = vpack.c.b16 %v1526, %v1524
    %v1627 = vpack.c.b16 %v1527, %v1525
    %v1628 = vpack.c.b16 %v1530, %v1528
    %v1629 = vpack.c.b16 %v1531, %v1529
    %v1630 = vpack.c.b16 %v1534, %v1532
    %v1631 = vpack.c.b16 %v1535, %v1533
    %v1632 = vpack.c.b16 %v1538, %v1536
    %v1633 = vpack.c.b16 %v1539, %v1537
    %v1634 = vpack.c.b16 %v1542, %v1540
    %v1635 = vpack.c.b16 %v1543, %v1541
    %v1636 = vpack.c.b16 %v1546, %v1544
    %v1637 = vpack.c.b16 %v1547, %v1545
    %v1638 = vpack.c.b16 %v1550, %v1548
    %v1639 = vpack.c.b16 %v1551, %v1549
    %v1640 = vpack.c.b16 %v1554, %v1552
    %v1641 = vpack.c.b16 %v1555, %v1553
    %v1642 = vpack.c.b16 %v1558, %v1556
    %v1643 = vpack.c.b16 %v1559, %v1557
    %v1644 = vpack.c.b16 %v1562, %v1560
    %v1645 = vpack.c.b16 %v1563, %v1561
    %v1646 = vpack.c.b16 %v1566, %v1564
    %v1647 = vpack.c.b16 %v1567, %v1565
    %v1648 = vpack.c.b16 %v1570, %v1568
    %v1649 = vpack.c.b16 %v1571, %v1569
    %v1650 = vpack.c.b16 %v1574, %v1572
    %v1651 = vpack.c.b16 %v1575, %v1573
    %v1652 = vpack.c.b16 %v1578, %v1576
    %v1653 = vpack.c.b16 %v1579, %v1577
    %v1654 = vpack.c.b16 %v1582, %v1580
    %v1655 = vpack.c.b16 %v1583, %v1581
    %v1656 = vpack.c.b16 %v1586, %v1584
    %v1657 = vpack.c.b16 %v1587, %v1585
    %v1658 = vpack.c.b16 %v1590, %v1588
    %v1659 = vpack.c.b16 %v1591, %v1589
    %v1660 = vpack.c.b16 %v1594, %v1592
    %v1661 = vpack.c.b16 %v1595, %v1593
    %v1662 = vpack.c.b16 %v1598, %v1596
    %v1663 = vpack.c.b16 %v1599, %v1597
    %1728 = vmatprep.subr.bf16.mxu0 %v1601
    %1729 = vmatpush1.bf16.msra.mxu0 %v1600
    %1730 = vmatprep.subr.bf16.mxu0 %v1603
    %1731 = vmatpush1.bf16.msra.mxu0 %v1602
    %1732 = vmatprep.subr.bf16.mxu0 %v1605
    %1733 = vmatpush1.bf16.msra.mxu0 %v1604
    %1734 = vmatprep.subr.bf16.mxu0 %v1607
    %1735 = vmatpush1.bf16.msra.mxu0 %v1606
    %1736 = vmatprep.subr.bf16.mxu0 %v1609
    %1737 = vmatpush1.bf16.msra.mxu0 %v1608
    %1738 = vmatprep.subr.bf16.mxu0 %v1611
    %1739 = vmatpush1.bf16.msra.mxu0 %v1610
    %1740 = vmatprep.subr.bf16.mxu0 %v1613
    %1741 = vmatpush1.bf16.msra.mxu0 %v1612
    %1742 = vmatprep.subr.bf16.mxu0 %v1615
    %1743 = vmatpush1.bf16.msra.mxu0 %v1614
    %1744 = vmatprep.subr.bf16.mxu0 %v1617
    %1745 = vmatpush1.bf16.msra.mxu0 %v1616
    %1746 = vmatprep.subr.bf16.mxu0 %v1619
    %1747 = vmatpush1.bf16.msra.mxu0 %v1618
    %1748 = vmatprep.subr.bf16.mxu0 %v1621
    %1749 = vmatpush1.bf16.msra.mxu0 %v1620
    %1750 = vmatprep.subr.bf16.mxu0 %v1623
    %1751 = vmatpush1.bf16.msra.mxu0 %v1622
    %1752 = vmatprep.subr.bf16.mxu0 %v1625
    %1753 = vmatpush1.bf16.msra.mxu0 %v1624
    %1754 = vmatprep.subr.bf16.mxu0 %v1627
    %1755 = vmatpush1.bf16.msra.mxu0 %v1626
    %1756 = vmatprep.subr.bf16.mxu0 %v1629
    %1757 = vmatpush1.bf16.msra.mxu0 %v1628
    %1758 = vmatprep.subr.bf16.mxu0 %v1631
    %1759 = vmatpush1.bf16.msra.mxu0 %v1630
    %1760 = vmatprep.mubr.bf16.mxu0 %v1333
    %1761 = vmatmul.mubr.bf16.gmra.mrb[0].mxu0 %v1332
    %v1762 = vpop.f32.mrb[0].mxu0
    %v1763 = vadd.f32 %v1403, %v1762
    %v1764 = vpop.f32.mrb[0].mxu0
    %v1765 = vadd.f32 %v1407, %v1764
    %v1766 = vpop.f32.mrb[0].mxu0
    %v1767 = vpop.f32.mrb[0].mxu0
    %1768 = vdwg.mxu0
    %1769 = vmatprep.subr.bf16.mxu0 %v1633
    %1770 = vmatpush1.bf16.msra.mxu0 %v1632
    %1771 = vmatprep.subr.bf16.mxu0 %v1635
    %1772 = vmatpush1.bf16.msra.mxu0 %v1634
    %1773 = vmatprep.subr.bf16.mxu0 %v1637
    %1774 = vmatpush1.bf16.msra.mxu0 %v1636
    %1775 = vmatprep.subr.bf16.mxu0 %v1639
    %1776 = vmatpush1.bf16.msra.mxu0 %v1638
    %1777 = vmatprep.subr.bf16.mxu0 %v1641
    %1778 = vmatpush1.bf16.msra.mxu0 %v1640
    %1779 = vmatprep.subr.bf16.mxu0 %v1643
    %1780 = vmatpush1.bf16.msra.mxu0 %v1642
    %1781 = vmatprep.subr.bf16.mxu0 %v1645
    %1782 = vmatpush1.bf16.msra.mxu0 %v1644
    %1783 = vmatprep.subr.bf16.mxu0 %v1647
    %1784 = vmatpush1.bf16.msra.mxu0 %v1646
    %1785 = vmatprep.subr.bf16.mxu0 %v1649
    %1786 = vmatpush1.bf16.msra.mxu0 %v1648
    %1787 = vmatprep.subr.bf16.mxu0 %v1651
    %1788 = vmatpush1.bf16.msra.mxu0 %v1650
    %1789 = vmatprep.subr.bf16.mxu0 %v1653
    %1790 = vmatpush1.bf16.msra.mxu0 %v1652
    %1791 = vmatprep.subr.bf16.mxu0 %v1655
    %1792 = vmatpush1.bf16.msra.mxu0 %v1654
    %1793 = vmatprep.subr.bf16.mxu0 %v1657
    %1794 = vmatpush1.bf16.msra.mxu0 %v1656
    %1795 = vmatprep.subr.bf16.mxu0 %v1659
    %1796 = vmatpush1.bf16.msra.mxu0 %v1658
    %1797 = vmatprep.subr.bf16.mxu0 %v1661
    %1798 = vmatpush1.bf16.msra.mxu0 %v1660
    %1799 = vmatprep.subr.bf16.mxu0 %v1663
    %1800 = vmatpush1.bf16.msra.mxu0 %v1662
    %1801 = vmatprep.mubr.bf16.mxu0 %v1335
    %1802 = vmatmul.mubr.bf16.gmra.mrb[0].mxu0 %v1334
    %v1803 = vpop.f32.mrb[0].mxu0
    %v1804 = vadd.f32 %v1763, %v1803
    %v1805 = vpop.f32.mrb[0].mxu0
    %v1806 = vadd.f32 %v1765, %v1805
    %v1807 = vpop.f32.mrb[0].mxu0
    %v1808 = vpop.f32.mrb[0].mxu0
    %1809 = vdwg.mxu0
    %v1810 = vmax.f32 %v1804, 0.0
    %v1811 = vmax.f32 %v1806, 0.0
    %v1812 = vpack.c.bf16 %v1810, %v1810
    %v1813 = vpack.c.bf16 %v1811, %v1811
    %v1814 = vld [vmem:[#allocation7] sm:$0xf]
    %v1815 = vld [vmem:[#allocation7 + $0x4] sm:$0xf]
    %v1816 = vld [vmem:[#allocation7 + $0x8] sm:$0xf]
    %v1817 = vld [vmem:[#allocation7 + $0xc] sm:$0xf]
    %v1818 = vld [vmem:[#allocation7 + $0x10] sm:$0xf]
    %v1819 = vld [vmem:[#allocation7 + $0x14] sm:$0xf]
    %v1820 = vld [vmem:[#allocation7 + $0x18] sm:$0xf]
    %v1821 = vld [vmem:[#allocation7 + $0x1c] sm:$0xf]
    %v1822 = vld [vmem:[#allocation7 + $0x20] sm:$0xf]
    %v1823 = vld [vmem:[#allocation7 + $0x24] sm:$0xf]
    %v1824 = vld [vmem:[#allocation7 + $0x28] sm:$0xf]
    %v1825 = vld [vmem:[#allocation7 + $0x2c] sm:$0xf]
    %v1826 = vld [vmem:[#allocation7 + $0x30] sm:$0xf]
    %v1827 = vld [vmem:[#allocation7 + $0x34] sm:$0xf]
    %v1828 = vld [vmem:[#allocation7 + $0x38] sm:$0xf]
    %v1829 = vld [vmem:[#allocation7 + $0x3c] sm:$0xf]
    %v1830 = vld [vmem:[#allocation7 + $0x40] sm:$0xf]
    %v1831 = vld [vmem:[#allocation7 + $0x44] sm:$0xf]
    %v1832 = vld [vmem:[#allocation7 + $0x48] sm:$0xf]
    %v1833 = vld [vmem:[#allocation7 + $0x4c] sm:$0xf]
    %v1834 = vld [vmem:[#allocation7 + $0x50] sm:$0xf]
    %v1835 = vld [vmem:[#allocation7 + $0x54] sm:$0xf]
    %v1836 = vld [vmem:[#allocation7 + $0x58] sm:$0xf]
    %v1837 = vld [vmem:[#allocation7 + $0x5c] sm:$0xf]
    %v1838 = vld [vmem:[#allocation7 + $0x60] sm:$0xf]
    %v1839 = vld [vmem:[#allocation7 + $0x64] sm:$0xf]
    %v1840 = vld [vmem:[#allocation7 + $0x68] sm:$0xf]
    %v1841 = vld [vmem:[#allocation7 + $0x6c] sm:$0xf]
    %v1842 = vld [vmem:[#allocation7 + $0x70] sm:$0xf]
    %v1843 = vld [vmem:[#allocation7 + $0x74] sm:$0xf]
    %v1844 = vld [vmem:[#allocation7 + $0x78] sm:$0xf]
    %v1845 = vld [vmem:[#allocation7 + $0x7c] sm:$0xf]
    %v1846 = vlaneseq
    %v1847 = vshrl.u32 %v1846, 7
    %v1848 = vsub.s32 3, %v1847
    %v1849 = vrot.slane %v96, %v1848
    %v1882 = vunpack.c.l.b16 %v1814
    %v1883 = vunpack.c.l.b16 %v1815
    %v1884 = vunpack.c.l.b16 %v1816
    %v1885 = vunpack.c.l.b16 %v1817
    %v1886 = vunpack.c.l.b16 %v1818
    %v1887 = vunpack.c.l.b16 %v1819
    %v1888 = vunpack.c.l.b16 %v1820
    %v1889 = vunpack.c.l.b16 %v1821
    %v1890 = vunpack.c.l.b16 %v1822
    %v1891 = vunpack.c.l.b16 %v1823
    %v1892 = vunpack.c.l.b16 %v1824
    %v1893 = vunpack.c.l.b16 %v1825
    %v1894 = vunpack.c.l.b16 %v1826
    %v1895 = vunpack.c.l.b16 %v1827
    %v1896 = vunpack.c.l.b16 %v1828
    %v1897 = vunpack.c.l.b16 %v1829
    %v1898 = vunpack.c.l.b16 %v1830
    %v1899 = vunpack.c.l.b16 %v1831
    %v1900 = vunpack.c.l.b16 %v1832
    %v1901 = vunpack.c.l.b16 %v1833
    %v1902 = vunpack.c.l.b16 %v1834
    %v1903 = vunpack.c.l.b16 %v1835
    %v1904 = vunpack.c.l.b16 %v1836
    %v1905 = vunpack.c.l.b16 %v1837
    %v1906 = vunpack.c.l.b16 %v1838
    %v1907 = vunpack.c.l.b16 %v1839
    %v1908 = vunpack.c.l.b16 %v1840
    %v1909 = vunpack.c.l.b16 %v1841
    %v1910 = vunpack.c.l.b16 %v1842
    %v1911 = vunpack.c.l.b16 %v1843
    %v1912 = vunpack.c.l.b16 %v1844
    %v1913 = vunpack.c.l.b16 %v1845
    %v1914 = vpack.c.b16 %v1883, %v1882
    %v1915 = vpack.c.b16 %v1885, %v1884
    %v1916 = vpack.c.b16 %v1887, %v1886
    %v1917 = vpack.c.b16 %v1889, %v1888
    %v1918 = vpack.c.b16 %v1891, %v1890
    %v1919 = vpack.c.b16 %v1893, %v1892
    %v1920 = vpack.c.b16 %v1895, %v1894
    %v1921 = vpack.c.b16 %v1897, %v1896
    %v1922 = vpack.c.b16 %v1899, %v1898
    %v1923 = vpack.c.b16 %v1901, %v1900
    %v1924 = vpack.c.b16 %v1903, %v1902
    %v1925 = vpack.c.b16 %v1905, %v1904
    %v1926 = vpack.c.b16 %v1907, %v1906
    %v1927 = vpack.c.b16 %v1909, %v1908
    %v1928 = vpack.c.b16 %v1911, %v1910
    %v1929 = vpack.c.b16 %v1913, %v1912
    %1946 = vmatprep.subr.bf16.mxu0 0
    %1947 = vmatpush1.bf16.msra.mxu0 %v1914
    %1948 = vmatprep.subr.bf16.mxu0 0
    %1949 = vmatpush1.bf16.msra.mxu0 %v1915
    %1950 = vmatprep.subr.bf16.mxu0 0
    %1951 = vmatpush1.bf16.msra.mxu0 %v1916
    %1952 = vmatprep.subr.bf16.mxu0 0
    %1953 = vmatpush1.bf16.msra.mxu0 %v1917
    %1954 = vmatprep.subr.bf16.mxu0 0
    %1955 = vmatpush1.bf16.msra.mxu0 %v1918
    %1956 = vmatprep.subr.bf16.mxu0 0
    %1957 = vmatpush1.bf16.msra.mxu0 %v1919
    %1958 = vmatprep.subr.bf16.mxu0 0
    %1959 = vmatpush1.bf16.msra.mxu0 %v1920
    %1960 = vmatprep.subr.bf16.mxu0 0
    %1961 = vmatpush1.bf16.msra.mxu0 %v1921
    %1962 = vmatprep.subr.bf16.mxu0 0
    %1963 = vmatpush1.bf16.msra.mxu0 %v1922
    %1964 = vmatprep.subr.bf16.mxu0 0
    %1965 = vmatpush1.bf16.msra.mxu0 %v1923
    %1966 = vmatprep.subr.bf16.mxu0 0
    %1967 = vmatpush1.bf16.msra.mxu0 %v1924
    %1968 = vmatprep.subr.bf16.mxu0 0
    %1969 = vmatpush1.bf16.msra.mxu0 %v1925
    %1970 = vmatprep.subr.bf16.mxu0 0
    %1971 = vmatpush1.bf16.msra.mxu0 %v1926
    %1972 = vmatprep.subr.bf16.mxu0 0
    %1973 = vmatpush1.bf16.msra.mxu0 %v1927
    %1974 = vmatprep.subr.bf16.mxu0 0
    %1975 = vmatpush1.bf16.msra.mxu0 %v1928
    %1976 = vmatprep.subr.bf16.mxu0 0
    %1977 = vmatpush1.bf16.msra.mxu0 %v1929
    %1978 = vmatprep.mubr.bf16.mxu0 %v1813
    %1979 = vmatmul.mubr.bf16.gmra.mrb[0].mxu0 %v1812
    %v1980 = vpop.f32.mrb[0].mxu0
    %v1981 = vadd.f32 %v1849, %v1980
    %v1982 = vpop.f32.mrb[0].mxu0
    %v1983 = vpop.f32.mrb[0].mxu0
    %v1984 = vpop.f32.mrb[0].mxu0
    %1985 = vdwg.mxu0
    %v1986 = vmax.f32 %v1981, 0.0
    %v1987 = vpack.c.bf16 %v1986, %v1986
    %v1988 = vld [vmem:[%s5] sm:$0xf]
    %v1989 = vld [vmem:[%s5 + $0x4] sm:$0xf]
    %v1990 = vld [vmem:[%s5 + $0x8] sm:$0xf]
    %v1991 = vld [vmem:[%s5 + $0xc] sm:$0xf]
    %v1992 = vld [vmem:[%s5 + $0x10] sm:$0xf]
    %v1993 = vld [vmem:[%s5 + $0x14] sm:$0xf]
    %v1994 = vld [vmem:[%s5 + $0x18] sm:$0xf]
    %v1995 = vld [vmem:[%s5 + $0x1c] sm:$0xf]
    %v1996 = vld [vmem:[%s5 + $0x20] sm:$0xf]
    %v1997 = vld [vmem:[%s5 + $0x24] sm:$0xf]
    %v1998 = vld [vmem:[%s5 + $0x28] sm:$0xf]
    %v1999 = vld [vmem:[%s5 + $0x2c] sm:$0xf]
    %v2000 = vld [vmem:[%s5 + $0x30] sm:$0xf]
    %v2001 = vld [vmem:[%s5 + $0x34] sm:$0xf]
    %v2002 = vld [vmem:[%s5 + $0x38] sm:$0xf]
    %v2003 = vld [vmem:[%s5 + $0x3c] sm:$0xf]
    %v2004 = vlaneseq
    %v2005 = vshrl.u32 %v2004, 7
    %v2006 = vsub.s32 4, %v2005
    %v2007 = vrot.slane %v96, %v2006
    %v2024 = vunpack.c.l.b16 %v1988
    %v2025 = vunpack.c.l.b16 %v1989
    %v2026 = vunpack.c.l.b16 %v1990
    %v2027 = vunpack.c.l.b16 %v1991
    %v2028 = vunpack.c.l.b16 %v1992
    %v2029 = vunpack.c.l.b16 %v1993
    %v2030 = vunpack.c.l.b16 %v1994
    %v2031 = vunpack.c.l.b16 %v1995
    %v2032 = vunpack.c.l.b16 %v1996
    %v2033 = vunpack.c.l.b16 %v1997
    %v2034 = vunpack.c.l.b16 %v1998
    %v2035 = vunpack.c.l.b16 %v1999
    %v2036 = vunpack.c.l.b16 %v2000
    %v2037 = vunpack.c.l.b16 %v2001
    %v2038 = vunpack.c.l.b16 %v2002
    %v2039 = vunpack.c.l.b16 %v2003
    %v2040 = vpack.c.b16 %v2025, %v2024
    %v2041 = vpack.c.b16 %v2027, %v2026
    %v2042 = vpack.c.b16 %v2029, %v2028
    %v2043 = vpack.c.b16 %v2031, %v2030
    %v2044 = vpack.c.b16 %v2033, %v2032
    %v2045 = vpack.c.b16 %v2035, %v2034
    %v2046 = vpack.c.b16 %v2037, %v2036
    %v2047 = vpack.c.b16 %v2039, %v2038
    %2056 = vmatprep.subr.bf16.mxu0 0
    %2057 = vmatpush1.bf16.msra.mxu0 %v2040
    %2058 = vmatprep.subr.bf16.mxu0 0
    %2059 = vmatpush1.bf16.msra.mxu0 %v2041
    %2060 = vmatprep.subr.bf16.mxu0 0
    %2061 = vmatpush1.bf16.msra.mxu0 %v2042
    %2062 = vmatprep.subr.bf16.mxu0 0
    %2063 = vmatpush1.bf16.msra.mxu0 %v2043
    %2064 = vmatprep.subr.bf16.mxu0 0
    %2065 = vmatpush1.bf16.msra.mxu0 %v2044
    %2066 = vmatprep.subr.bf16.mxu0 0
    %2067 = vmatpush1.bf16.msra.mxu0 %v2045
    %2068 = vmatprep.subr.bf16.mxu0 0
    %2069 = vmatpush1.bf16.msra.mxu0 %v2046
    %2070 = vmatprep.subr.bf16.mxu0 0
    %2071 = vmatpush1.bf16.msra.mxu0 %v2047
    %2072 = vmatprep.subr.bf16.mxu0 0
    %2073 = vmatpush1.bf16.msra.mxu0 0
    %2074 = vmatprep.subr.bf16.mxu0 0
    %2075 = vmatpush1.bf16.msra.mxu0 0
    %2076 = vmatprep.subr.bf16.mxu0 0
    %2077 = vmatpush1.bf16.msra.mxu0 0
    %2078 = vmatprep.subr.bf16.mxu0 0
    %2079 = vmatpush1.bf16.msra.mxu0 0
    %2080 = vmatprep.subr.bf16.mxu0 0
    %2081 = vmatpush1.bf16.msra.mxu0 0
    %2082 = vmatprep.subr.bf16.mxu0 0
    %2083 = vmatpush1.bf16.msra.mxu0 0
    %2084 = vmatprep.subr.bf16.mxu0 0
    %2085 = vmatpush1.bf16.msra.mxu0 0
    %2086 = vmatprep.subr.bf16.mxu0 0
    %2087 = vmatpush1.bf16.msra.mxu0 0
    %2088 = vmatprep.mubr.bf16.mxu0 0
    %2089 = vmatmul.mubr.bf16.gmra.mrb[0].mxu0 %v1987
    %v2090 = vpop.f32.mrb[0].mxu0
    %v2091 = vadd.f32 %v2007, %v2090
    %v2092 = vpop.f32.mrb[0].mxu0
    %v2093 = vpop.f32.mrb[0].mxu0
    %v2094 = vpop.f32.mrb[0].mxu0
    %2095 = vdwg.mxu0
    %v2096 = vmax.f32 %v2091, 0.0
    %v2097 = vpack.c.bf16 %v2096, %v2096
    %v2098 = vld [vmem:[%s6] sm:$0xf]
    %v2099 = vld [vmem:[%s6 + $0x4] sm:$0xf]
    %v2100 = vld [vmem:[%s6 + $0x8] sm:$0xf]
    %v2101 = vld [vmem:[%s6 + $0xc] sm:$0xf]
    %v2102 = vld [vmem:[%s6 + $0x10] sm:$0xf]
    %v2103 = vld [vmem:[%s6 + $0x14] sm:$0xf]
    %v2104 = vld [vmem:[%s6 + $0x18] sm:$0xf]
    %v2105 = vld [vmem:[%s6 + $0x1c] sm:$0xf]
    %v2106 = vld [vmem:[%s6 + $0x20] sm:$0xf]
    %v2107 = vld [vmem:[%s6 + $0x24] sm:$0xf]
    %v2108 = vld [vmem:[%s6 + $0x28] sm:$0xf]
    %v2109 = vld [vmem:[%s6 + $0x2c] sm:$0xf]
    %v2110 = vld [vmem:[%s6 + $0x30] sm:$0xf]
    %v2111 = vld [vmem:[%s6 + $0x34] sm:$0xf]
    %v2112 = vld [vmem:[%s6 + $0x38] sm:$0xf]
    %v2113 = vld [vmem:[%s6 + $0x3c] sm:$0xf]
    %v2114 = vlaneseq
    %v2115 = vshrl.u32 %v2114, 7
    %v2116 = vsub.s32 5, %v2115
    %v2117 = vrot.slane %v96, %v2116
    %v2134 = vunpack.c.l.b16 %v2098
    %v2135 = vunpack.c.l.b16 %v2099
    %v2136 = vunpack.c.l.b16 %v2100
    %v2137 = vunpack.c.l.b16 %v2101
    %v2138 = vunpack.c.l.b16 %v2102
    %v2139 = vunpack.c.l.b16 %v2103
    %v2140 = vunpack.c.l.b16 %v2104
    %v2141 = vunpack.c.l.b16 %v2105
    %v2142 = vunpack.c.l.b16 %v2106
    %v2143 = vunpack.c.l.b16 %v2107
    %v2144 = vunpack.c.l.b16 %v2108
    %v2145 = vunpack.c.l.b16 %v2109
    %v2146 = vunpack.c.l.b16 %v2110
    %v2147 = vunpack.c.l.b16 %v2111
    %v2148 = vunpack.c.l.b16 %v2112
    %v2149 = vunpack.c.l.b16 %v2113
    %v2150 = vpack.c.b16 %v2135, %v2134
    %v2151 = vpack.c.b16 %v2137, %v2136
    %v2152 = vpack.c.b16 %v2139, %v2138
    %v2153 = vpack.c.b16 %v2141, %v2140
    %v2154 = vpack.c.b16 %v2143, %v2142
    %v2155 = vpack.c.b16 %v2145, %v2144
    %v2156 = vpack.c.b16 %v2147, %v2146
    %v2157 = vpack.c.b16 %v2149, %v2148
    %2166 = vmatprep.subr.bf16.mxu0 0
    %2167 = vmatpush1.bf16.msra.mxu0 %v2150
    %2168 = vmatprep.subr.bf16.mxu0 0
    %2169 = vmatpush1.bf16.msra.mxu0 %v2151
    %2170 = vmatprep.subr.bf16.mxu0 0
    %2171 = vmatpush1.bf16.msra.mxu0 %v2152
    %2172 = vmatprep.subr.bf16.mxu0 0
    %2173 = vmatpush1.bf16.msra.mxu0 %v2153
    %2174 = vmatprep.subr.bf16.mxu0 0
    %2175 = vmatpush1.bf16.msra.mxu0 %v2154
    %2176 = vmatprep.subr.bf16.mxu0 0
    %2177 = vmatpush1.bf16.msra.mxu0 %v2155
    %2178 = vmatprep.subr.bf16.mxu0 0
    %2179 = vmatpush1.bf16.msra.mxu0 %v2156
    %2180 = vmatprep.subr.bf16.mxu0 0
    %2181 = vmatpush1.bf16.msra.mxu0 %v2157
    %2182 = vmatprep.subr.bf16.mxu0 0
    %2183 = vmatpush1.bf16.msra.mxu0 0
    %2184 = vmatprep.subr.bf16.mxu0 0
    %2185 = vmatpush1.bf16.msra.mxu0 0
    %2186 = vmatprep.subr.bf16.mxu0 0
    %2187 = vmatpush1.bf16.msra.mxu0 0
    %2188 = vmatprep.subr.bf16.mxu0 0
    %2189 = vmatpush1.bf16.msra.mxu0 0
    %2190 = vmatprep.subr.bf16.mxu0 0
    %2191 = vmatpush1.bf16.msra.mxu0 0
    %2192 = vmatprep.subr.bf16.mxu0 0
    %2193 = vmatpush1.bf16.msra.mxu0 0
    %2194 = vmatprep.subr.bf16.mxu0 0
    %2195 = vmatpush1.bf16.msra.mxu0 0
    %2196 = vmatprep.subr.bf16.mxu0 0
    %2197 = vmatpush1.bf16.msra.mxu0 0
    %2198 = vmatprep.mubr.bf16.mxu0 0
    %2199 = vmatmul.mubr.bf16.gmra.mrb[0].mxu0 %v2097
    %v2200 = vpop.f32.mrb[0].mxu0
    %v2201 = vadd.f32 %v2117, %v2200
    %v2202 = vpop.f32.mrb[0].mxu0
    %v2203 = vpop.f32.mrb[0].mxu0
    %v2204 = vpop.f32.mrb[0].mxu0
    %2205 = vdwg.mxu0
    %vm2206 = vcmask 15360
    %2207 = vst.msk [vmem:[%s8] sm:$0xff] %vm2206, %v2201
    // Predicated region
    $region54: #{tpu_custom_call.1} parent=1 // pred_check
      _
    $region55: #{tpu_custom_call.1} parent=1 // pred_check_branch
      %2209 = sbr.rel (0) target = $region57
    $region56: #{tpu_custom_call.1} parent=1 // pred_region
      _
    $region57: #{tpu_custom_call.1} parent=1 // pred_fallthru
      _
    // Predicated region
    $region58: #{tpu_custom_call.1} parent=1 // pred_check
      _
    $region59: #{tpu_custom_call.1} parent=1 // pred_check_branch
      %2211 = sbr.rel (0) target = $region61
    $region60: #{tpu_custom_call.1} parent=1 // pred_region
      _
    $region61: #{tpu_custom_call.1} parent=1 // pred_fallthru
      _
    %2212 = vsyncpa [#allocation3], 1
    %2213 = vsyncpa [#allocation5], 1
    %2214 = vsyncpa [#allocation8], 1

</llo_original>
